<compile_context>
chip_gen: v7x
topology: tpu7x:2x2x1
jax: 0.10.0
libtpu: 0.0.40
codegen_flags: <defaults>
</compile_context>

<pallas_src>
import functools

import jax
import jax.numpy as jnp
from jax.experimental import pallas as pl
from jax.experimental.pallas import tpu as pltpu


def _round_up(x, m):
    return -(-x // m) * m


def _sigmoid(x):
    # sigmoid(x) == 0.5*(1 + tanh(x/2)): single EUP push (tanh); the 0.5*/+1
    # go to VPU slots which have slack in the recurrence.
    return 0.5 * (jnp.tanh(0.5 * x) + 1.0)


def _lstm_kernel(ids_ref, emb_ref, wih_ref, whh_ref, b_ref, wfc_ref, bfc_ref,
                 out_ref, h_sc, c_sc, xg_sc, *, seq_len, time_chunk, vocab_pad):
    c_idx = pl.program_id(1)

    @pl.when(c_idx == 0)
    def _():
        h_sc[...] = jnp.zeros_like(h_sc)
        c_sc[...] = jnp.zeros_like(c_sc)

    bb, H = h_sc.shape
    rows = time_chunk * bb

    # ---- Phase 0+1: fused embedding gather + input projection for the whole
    # chunk, as two chunk-wide GEMMs on the MXU (bf16 operands, f32 acc).
    ids = ids_ref[...]                                           # (rows, 1) i32
    onehot = (jax.lax.broadcasted_iota(jnp.int32, (rows, vocab_pad), 1)
              == ids).astype(jnp.bfloat16)                       # (rows, Vp)
    x = jnp.dot(onehot, emb_ref[...],
                preferred_element_type=jnp.float32)              # (rows, E)
    xg = jnp.dot(x.astype(jnp.bfloat16), wih_ref[...],
                 preferred_element_type=jnp.float32) + b_ref[...]
    # bf16 scratch halves the largest VMEM consumer (matters on v7x's 64 MiB).
    xg_sc[...] = xg.astype(jnp.bfloat16)

    w_hh = whh_ref[...]     # bf16 (H, 4H), loaded once, resident for the loop

    # ---- Phase 2: serial recurrence.  Per step: one (bb,H)@(H,4H) matmul plus
    # VPU/EUP gate math; f32 hidden/cell state.
    def step(t, carry):
        h, c = carry
        row = pl.multiple_of(t * bb, bb)
        gates = (xg_sc[pl.ds(row, bb), :].astype(jnp.float32)
                 + jnp.dot(h.astype(jnp.bfloat16), w_hh,
                           preferred_element_type=jnp.float32))
        i_g = _sigmoid(gates[:, 0 * H:1 * H])
        f_g = _sigmoid(gates[:, 1 * H:2 * H])
        g_g = jnp.tanh(gates[:, 2 * H:3 * H])
        o_g = _sigmoid(gates[:, 3 * H:4 * H])
        c_new = f_g * c + i_g * g_g
        h_new = o_g * jnp.tanh(c_new)
        if seq_len % time_chunk != 0:
            # Sequence was zero-padded up to a chunk multiple: padded steps
            # must leave the state untouched (PyTorch ran only seq_len steps).
            valid = (c_idx * time_chunk + t) < seq_len
            h_new = jnp.where(valid, h_new, h)
            c_new = jnp.where(valid, c_new, c)
        return h_new, c_new

    h, c = jax.lax.fori_loop(0, time_chunk, step, (h_sc[...], c_sc[...]),
                             unroll=min(time_chunk, 8))
    h_sc[...] = h
    c_sc[...] = c

    # ---- Phase 3 (last chunk of this batch block): Linear + Sigmoid into a
    # lane-dense (bb, 128)-padded output slab.
    @pl.when(c_idx == pl.num_programs(1) - 1)
    def _():
        logits = (jnp.dot(h.astype(jnp.bfloat16), wfc_ref[...],
                          preferred_element_type=jnp.float32) + bfc_ref[...])
        out_ref[...] = _sigmoid(logits).astype(out_ref.dtype)


def lstm_classifier_forward(token_ids, params, *, time_chunk=None,
                            batch_block=None):
    """token_ids: (B, T) int -> (B, output_dim) float32 probabilities."""
    B, T = token_ids.shape
    V, E = params["embedding"].shape
    H = params["w_hh"].shape[0]
    O = params["w_fc"].shape[1]

    # ---- Batch blocking: bb rows per block (multiple of 16 so bf16 sublane
    # slices of xg_sc are tile-aligned), capped at 128 so each block's
    # (bb,H)@(H,4H) step matmul fills the MXU height; extra blocks form a
    # "parallel" grid axis that v7x's two TensorCores can shard.
    B_pad16 = max(16, _round_up(B, 16))
    bb = batch_block if batch_block is not None else min(B_pad16, 128)
    bb = max(16, _round_up(bb, 16))
    n_bb = -(-B_pad16 // bb)
    B_pad = n_bb * bb

    # ---- Time chunking: target >=256 Phase-1 GEMM rows (MXU M on v6e/v7x;
    # 128 already suffices on v5e) without padding a short sequence past its
    # length, capped by a per-chunk VMEM budget.  Awkward / prime T is padded
    # with id 0 up to a chunk multiple (masked in the kernel), never chunk=1.
    V_pad = max(128, _round_up(V, 128))
    if time_chunk is None:
        tc = -(-256 // bb)
        tc = min(tc, T)
        per_row_bytes = 4 * H * (2 + 4) + V_pad * 2 + E * (4 + 2) + 4
        tc_vmem_cap = max(1, (8 << 20) // (bb * per_row_bytes))
        tc = max(1, min(tc, tc_vmem_cap))
    else:
        tc = max(1, int(time_chunk))
    n_chunks = -(-T // tc)
    T_pad = n_chunks * tc

    # ---- Host-side prep: only tiny int32 ids + weights go to the kernel.
    ids = token_ids.astype(jnp.int32)
    ids = jnp.pad(ids, ((0, B_pad - B), (0, T_pad - T)))          # pad id = 0
    # (n_bb, bb, T_pad) -> (n_bb, T_pad, bb): time-major within a batch block,
    # so step t of chunk c reads the contiguous row slab [t*bb, (t+1)*bb).
    ids = ids.reshape(n_bb, bb, T_pad).transpose(0, 2, 1)
    ids = ids.reshape(n_bb * T_pad * bb, 1)

    emb = jnp.pad(params["embedding"],
                  ((0, V_pad - V), (0, 0))).astype(jnp.bfloat16)   # (Vp, E)
    w_ih = params["w_ih"].astype(jnp.bfloat16)                     # (E, 4H)
    w_hh = params["w_hh"].astype(jnp.bfloat16)                     # (H, 4H)
    b = params["b"]                                                # (1, 4H) f32
    O_pad = max(128, _round_up(O, 128))
    w_fc = jnp.pad(params["w_fc"],
                   ((0, 0), (0, O_pad - O))).astype(jnp.bfloat16)  # (H, Op)
    b_fc = jnp.pad(params["b_fc"], ((0, 0), (0, O_pad - O)))       # (1, Op) f32

    kernel = functools.partial(_lstm_kernel, seq_len=T, time_chunk=tc,
                               vocab_pad=V_pad)

    # ---- Explicit VMEM budget: double-buffered inputs + resident scratch +
    # headroom for chunk intermediates (one-hot, x, f32 xg).  Chunk size was
    # already capped so this stays inside v7x's 64 MiB / v5e's scoped limit.
    est = (2 * (tc * bb * 4 + V_pad * E * 2 + E * 4 * H * 2 + H * 4 * H * 2
                + 4 * H * 4 + H * O_pad * 2 + O_pad * 4 + bb * O_pad * 4)
           + 2 * bb * H * 4 + tc * bb * 4 * H * 2
           + tc * bb * (V_pad * 2 + E * 4 + 4 * H * 4))
    vmem_limit = int(min(56 << 20, max(24 << 20, 2 * est)))

    out = pl.pallas_call(
        kernel,
        out_shape=jax.ShapeDtypeStruct((B_pad, O_pad), jnp.float32),
        grid_spec=pltpu.PrefetchScalarGridSpec(
            num_scalar_prefetch=0,
            grid=(n_bb, n_chunks),
            in_specs=[
                # token ids: (time-chunk x batch-block) slab of int32, tiny.
                pl.BlockSpec((tc * bb, 1),
                             lambda b_, c: (b_ * n_chunks + c, 0)),
                pl.BlockSpec((V_pad, E), lambda b_, c: (0, 0)),     # emb table
                pl.BlockSpec((E, 4 * H), lambda b_, c: (0, 0)),     # W_ih^T
                pl.BlockSpec((H, 4 * H), lambda b_, c: (0, 0)),     # W_hh^T
                pl.BlockSpec((1, 4 * H), lambda b_, c: (0, 0)),     # b_ih+b_hh
                pl.BlockSpec((H, O_pad), lambda b_, c: (0, 0)),     # W_fc^T
                pl.BlockSpec((1, O_pad), lambda b_, c: (0, 0)),     # b_fc
            ],
            out_specs=pl.BlockSpec((bb, O_pad), lambda b_, c: (b_, 0)),
            scratch_shapes=[
                pltpu.VMEM((bb, H), jnp.float32),                   # h state
                pltpu.VMEM((bb, H), jnp.float32),                   # c state
                pltpu.VMEM((tc * bb, 4 * H), jnp.bfloat16),          # x-gates
            ],
        ),
        compiler_params=pltpu.CompilerParams(
            # batch blocks are independent (v7x megacore shards them); the
            # time recurrence is strictly sequential.
            dimension_semantics=("parallel", "arbitrary"),
            vmem_limit_bytes=vmem_limit),
    )(ids, emb, w_ih, w_hh, b, w_fc, b_fc)

    return out[:B, :O]


def init_params(key, vocab_size, embedding_dim=64, hidden_dim=128, output_dim=1):
    k_emb, k_wih, k_whh, k_bih, k_bhh, k_wfc, k_bfc = jax.random.split(key, 7)
    s = 1.0 / jnp.sqrt(hidden_dim)

    emb = jax.random.normal(k_emb, (vocab_size, embedding_dim), jnp.float32)
    emb = emb.at[0].set(0.0)  # padding_idx=0

    # PyTorch stores weight_ih (4H, E), weight_hh (4H, H); we keep transposes.
    w_ih = jax.random.uniform(k_wih, (embedding_dim, 4 * hidden_dim),
                              jnp.float32, -s, s)
    w_hh = jax.random.uniform(k_whh, (hidden_dim, 4 * hidden_dim),
                              jnp.float32, -s, s)
    b_ih = jax.random.uniform(k_bih, (4 * hidden_dim,), jnp.float32, -s, s)
    b_hh = jax.random.uniform(k_bhh, (4 * hidden_dim,), jnp.float32, -s, s)
    b = (b_ih + b_hh).reshape(1, 4 * hidden_dim)

    w_fc = jax.random.uniform(k_wfc, (hidden_dim, output_dim), jnp.float32, -s, s)
    b_fc = jax.random.uniform(k_bfc, (output_dim,), jnp.float32, -s, s
                              ).reshape(1, output_dim)

    return {"embedding": emb, "w_ih": w_ih, "w_hh": w_hh, "b": b,
            "w_fc": w_fc, "b_fc": b_fc}


def reference_forward(token_ids, params):
    """Pure-JAX f32 reference replicating PyTorch LSTMClassifier.forward."""
    emb = jnp.take(params["embedding"], token_ids, axis=0)  # (B, T, E)
    B, T, E = emb.shape
    H = params["w_hh"].shape[0]
    h = jnp.zeros((B, H), jnp.float32)
    c = jnp.zeros((B, H), jnp.float32)
    for t in range(T):
        gates = emb[:, t, :] @ params["w_ih"] + h @ params["w_hh"] + params["b"]
        i_g = jax.nn.sigmoid(gates[:, 0 * H:1 * H])
        f_g = jax.nn.sigmoid(gates[:, 1 * H:2 * H])
        g_g = jnp.tanh(gates[:, 2 * H:3 * H])
        o_g = jax.nn.sigmoid(gates[:, 3 * H:4 * H])
        c = f_g * c + i_g * g_g
        h = o_g * jnp.tanh(c)
    return jax.nn.sigmoid(h @ params["w_fc"] + params["b_fc"])


if __name__ == "__main__":
    vocab_size = 50
    embedding_dim = 64
    hidden_dim = 128
    output_dim = 1
    batch, seq = 2, 8

    key = jax.random.PRNGKey(0)
    k_params, k_tokens = jax.random.split(key)
    params = init_params(k_params, vocab_size, embedding_dim, hidden_dim,
                         output_dim)
    token_ids = jax.random.randint(k_tokens, (batch, seq), 0, vocab_size,
                                   jnp.int32)

    out = lstm_classifier_forward(token_ids, params)
    out = jax.block_until_ready(out)

    ref = reference_forward(token_ids, params)
    assert out.shape == (batch, output_dim)
    # bf16 MXU operands + bf16 x-gate scratch vs. the pure-f32 reference ->
    # loosened tolerance; f32 accumulation and f32 h/c state keep the drift
    # well inside this bound.
    max_diff = float(jnp.max(jnp.abs(out - ref)))
    assert max_diff < 2e-2, (max_diff, out, ref)
    print("KERNEL_OK")
</pallas_src>

<mosaic_0001>
module attributes {stable_mosaic.version = 11 : i64} {
  func.func @_lstm_kernel(%arg0: i32, %arg1: i32, %arg2: memref<128x1xi32, #tpu.memory_space<vmem>>, %arg3: memref<128x64xbf16, #tpu.memory_space<vmem>>, %arg4: memref<64x512xbf16, #tpu.memory_space<vmem>>, %arg5: memref<128x512xbf16, #tpu.memory_space<vmem>>, %arg6: memref<1x512xf32, #tpu.memory_space<vmem>>, %arg7: memref<128x128xbf16, #tpu.memory_space<vmem>>, %arg8: memref<1x128xf32, #tpu.memory_space<vmem>>, %arg9: memref<16x128xf32, #tpu.memory_space<vmem>>, %arg10: memref<16x128xf32, #tpu.memory_space<vmem>>, %arg11: memref<16x128xf32, #tpu.memory_space<vmem>>, %arg12: memref<128x512xbf16, #tpu.memory_space<vmem>>) attributes {dimension_semantics = [#tpu.dimension_semantics<parallel>, #tpu.dimension_semantics<arbitrary>], iteration_bounds = array<i64: 1, 1>, scalar_prefetch = 0 : i64, scratch_operands = 3 : i64, tpu.core_type = #tpu.core_type<tc>, window_params = [{transform_indices = @transform_0, window_bounds = array<i64: 128, 1>}, {pipeline_mode = #tpu.pipeline_mode<synchronous>, transform_indices = @transform_1, window_bounds = array<i64: 128, 64>}, {pipeline_mode = #tpu.pipeline_mode<synchronous>, transform_indices = @transform_2, window_bounds = array<i64: 64, 512>}, {pipeline_mode = #tpu.pipeline_mode<synchronous>, transform_indices = @transform_3, window_bounds = array<i64: 128, 512>}, {pipeline_mode = #tpu.pipeline_mode<synchronous>, transform_indices = @transform_4, window_bounds = array<i64: 1, 512>}, {pipeline_mode = #tpu.pipeline_mode<synchronous>, transform_indices = @transform_5, window_bounds = array<i64: 128, 128>}, {pipeline_mode = #tpu.pipeline_mode<synchronous>, transform_indices = @transform_6, window_bounds = array<i64: 1, 128>}, {transform_indices = @transform_7, window_bounds = array<i64: 16, 128>}]} {
    %c0_i32 = arith.constant 0 : i32
    %0 = arith.cmpi eq, %arg1, %c0_i32 : i32
    %1 = arith.extui %0 : i1 to i32
    %c0_i32_0 = arith.constant 0 : i32
    %2 = arith.cmpi ne, %1, %c0_i32_0 : i32
    scf.if %2 {
      %cst_119 = arith.constant 0.000000e+00 : f32
      %340 = vector.broadcast %cst_119 : f32 to vector<16x128xf32>
      %c0_120 = arith.constant 0 : index
      %c0_121 = arith.constant 0 : index
      %341 = vector.load %arg10[%c0_120, %c0_121] : memref<16x128xf32, #tpu.memory_space<vmem>>, vector<16x128xf32>
      tpu.vector_store %arg10[%c0_120, %c0_121], %340 {strides = array<i32>} : memref<16x128xf32, #tpu.memory_space<vmem>>, vector<16x128xf32>,
      %cst_122 = arith.constant 0.000000e+00 : f32
      %342 = vector.broadcast %cst_122 : f32 to vector<16x128xf32>
      %c0_123 = arith.constant 0 : index
      %c0_124 = arith.constant 0 : index
      %343 = vector.load %arg11[%c0_123, %c0_124] : memref<16x128xf32, #tpu.memory_space<vmem>>, vector<16x128xf32>
      tpu.vector_store %arg11[%c0_123, %c0_124], %342 {strides = array<i32>} : memref<16x128xf32, #tpu.memory_space<vmem>>, vector<16x128xf32>,
    } else {
    }
    %c0 = arith.constant 0 : index
    %c0_1 = arith.constant 0 : index
    %3 = vector.load %arg2[%c0, %c0_1] : memref<128x1xi32, #tpu.memory_space<vmem>>, vector<128x1xi32>
    %4 = tpu.iota {dimensions = array<i32: 1>} : vector<128x128xi32>
    %5 = vector.broadcast %3 : vector<128x1xi32> to vector<128x128xi32>
    %6 = arith.cmpi eq, %4, %5 : vector<128x128xi32>
    %7 = arith.extui %6 : vector<128x128xi1> to vector<128x128xi32>
    %8 = arith.sitofp %7 : vector<128x128xi32> to vector<128x128xf32>
    %9 = arith.truncf %8 : vector<128x128xf32> to vector<128x128xbf16>
    %c0_2 = arith.constant 0 : index
    %c0_3 = arith.constant 0 : index
    %10 = vector.load %arg3[%c0_2, %c0_3] : memref<128x64xbf16, #tpu.memory_space<vmem>>, vector<128x64xbf16>
    %cst = arith.constant dense<0.000000e+00> : vector<128x64xf32>
    %11 = tpu.matmul %9, %10, %cst {dimension_numbers = #tpu.dot_dimension_numbers<[1], [0], [0], [1], [0, 0, 1, 1], [], []>} : vector<128x128xbf16>, vector<128x64xbf16>, vector<128x64xf32> -> vector<128x64xf32>
    %12 = arith.truncf %11 : vector<128x64xf32> to vector<128x64xbf16>
    %c0_4 = arith.constant 0 : index
    %c0_5 = arith.constant 0 : index
    %13 = vector.load %arg4[%c0_4, %c0_5] : memref<64x512xbf16, #tpu.memory_space<vmem>>, vector<64x512xbf16>
    %cst_6 = arith.constant dense<0.000000e+00> : vector<128x512xf32>
    %14 = tpu.matmul %12, %13, %cst_6 {dimension_numbers = #tpu.dot_dimension_numbers<[1], [0], [0], [1], [0, 0, 1, 1], [], []>} : vector<128x64xbf16>, vector<64x512xbf16>, vector<128x512xf32> -> vector<128x512xf32>
    %c0_7 = arith.constant 0 : index
    %c0_8 = arith.constant 0 : index
    %15 = vector.load %arg6[%c0_7, %c0_8] : memref<1x512xf32, #tpu.memory_space<vmem>>, vector<1x512xf32>
    %16 = vector.broadcast %15 : vector<1x512xf32> to vector<128x512xf32>
    %17 = arith.addf %14, %16 : vector<128x512xf32>
    %18 = arith.truncf %17 : vector<128x512xf32> to vector<128x512xbf16>
    %c0_9 = arith.constant 0 : index
    %c0_10 = arith.constant 0 : index
    %19 = vector.load %arg12[%c0_9, %c0_10] : memref<128x512xbf16, #tpu.memory_space<vmem>>, vector<128x512xbf16>
    tpu.vector_store %arg12[%c0_9, %c0_10], %18 {strides = array<i32>} : memref<128x512xbf16, #tpu.memory_space<vmem>>, vector<128x512xbf16>,
    %c0_11 = arith.constant 0 : index
    %c0_12 = arith.constant 0 : index
    %20 = vector.load %arg5[%c0_11, %c0_12] : memref<128x512xbf16, #tpu.memory_space<vmem>>, vector<128x512xbf16>
    %c0_13 = arith.constant 0 : index
    %c0_14 = arith.constant 0 : index
    %21 = vector.load %arg10[%c0_13, %c0_14] : memref<16x128xf32, #tpu.memory_space<vmem>>, vector<16x128xf32>
    %c0_15 = arith.constant 0 : index
    %c0_16 = arith.constant 0 : index
    %22 = vector.load %arg11[%c0_15, %c0_16] : memref<16x128xf32, #tpu.memory_space<vmem>>, vector<16x128xf32>
    %c0_i32_17 = arith.constant 0 : i32
    %c16_i32 = arith.constant 16 : i32
    %23 = arith.muli %c0_i32_17, %c16_i32 : i32
    %24 = tpu.assume_multiple %23, 16 : i32
    %25 = arith.index_cast %24 : i32 to index
    %c0_18 = arith.constant 0 : index
    %26 = vector.load %arg12[%25, %c0_18] : memref<128x512xbf16, #tpu.memory_space<vmem>>, vector<16x512xbf16>
    %27 = arith.extf %26 : vector<16x512xbf16> to vector<16x512xf32>
    %28 = arith.truncf %21 : vector<16x128xf32> to vector<16x128xbf16>
    %cst_19 = arith.constant dense<0.000000e+00> : vector<16x512xf32>
    %29 = tpu.matmul %28, %20, %cst_19 {dimension_numbers = #tpu.dot_dimension_numbers<[1], [0], [0], [1], [0, 0, 1, 1], [], []>} : vector<16x128xbf16>, vector<128x512xbf16>, vector<16x512xf32> -> vector<16x512xf32>
    %30 = arith.addf %27, %29 : vector<16x512xf32>
    %31 = vector.extract_strided_slice %30 {offsets = [0, 0], sizes = [16, 128], strides = [1, 1]} : vector<16x512xf32> to vector<16x128xf32>
    %cst_20 = arith.constant 5.000000e-01 : f32
    %32 = vector.broadcast %cst_20 : f32 to vector<16x128xf32>
    %33 = arith.mulf %32, %31 : vector<16x128xf32>
    %34 = math.tanh %33 : vector<16x128xf32>
    %cst_21 = arith.constant 1.000000e+00 : f32
    %35 = vector.broadcast %cst_21 : f32 to vector<16x128xf32>
    %36 = arith.addf %34, %35 : vector<16x128xf32>
    %cst_22 = arith.constant 5.000000e-01 : f32
    %37 = vector.broadcast %cst_22 : f32 to vector<16x128xf32>
    %38 = arith.mulf %37, %36 : vector<16x128xf32>
    %39 = vector.extract_strided_slice %30 {offsets = [0, 128], sizes = [16, 128], strides = [1, 1]} : vector<16x512xf32> to vector<16x128xf32>
    %cst_23 = arith.constant 5.000000e-01 : f32
    %40 = vector.broadcast %cst_23 : f32 to vector<16x128xf32>
    %41 = arith.mulf %40, %39 : vector<16x128xf32>
    %42 = math.tanh %41 : vector<16x128xf32>
    %cst_24 = arith.constant 1.000000e+00 : f32
    %43 = vector.broadcast %cst_24 : f32 to vector<16x128xf32>
    %44 = arith.addf %42, %43 : vector<16x128xf32>
    %cst_25 = arith.constant 5.000000e-01 : f32
    %45 = vector.broadcast %cst_25 : f32 to vector<16x128xf32>
    %46 = arith.mulf %45, %44 : vector<16x128xf32>
    %47 = vector.extract_strided_slice %30 {offsets = [0, 256], sizes = [16, 128], strides = [1, 1]} : vector<16x512xf32> to vector<16x128xf32>
    %48 = math.tanh %47 : vector<16x128xf32>
    %49 = vector.extract_strided_slice %30 {offsets = [0, 384], sizes = [16, 128], strides = [1, 1]} : vector<16x512xf32> to vector<16x128xf32>
    %cst_26 = arith.constant 5.000000e-01 : f32
    %50 = vector.broadcast %cst_26 : f32 to vector<16x128xf32>
    %51 = arith.mulf %50, %49 : vector<16x128xf32>
    %52 = math.tanh %51 : vector<16x128xf32>
    %cst_27 = arith.constant 1.000000e+00 : f32
    %53 = vector.broadcast %cst_27 : f32 to vector<16x128xf32>
    %54 = arith.addf %52, %53 : vector<16x128xf32>
    %cst_28 = arith.constant 5.000000e-01 : f32
    %55 = vector.broadcast %cst_28 : f32 to vector<16x128xf32>
    %56 = arith.mulf %55, %54 : vector<16x128xf32>
    %57 = arith.mulf %46, %22 : vector<16x128xf32>
    %58 = arith.mulf %38, %48 : vector<16x128xf32>
    %59 = arith.addf %57, %58 : vector<16x128xf32>
    %60 = math.tanh %59 : vector<16x128xf32>
    %61 = arith.mulf %56, %60 : vector<16x128xf32>
    %c1_i32 = arith.constant 1 : i32
    %c16_i32_29 = arith.constant 16 : i32
    %62 = arith.muli %c1_i32, %c16_i32_29 : i32
    %63 = tpu.assume_multiple %62, 16 : i32
    %64 = arith.index_cast %63 : i32 to index
    %c0_30 = arith.constant 0 : index
    %65 = vector.load %arg12[%64, %c0_30] : memref<128x512xbf16, #tpu.memory_space<vmem>>, vector<16x512xbf16>
    %66 = arith.extf %65 : vector<16x512xbf16> to vector<16x512xf32>
    %67 = arith.truncf %61 : vector<16x128xf32> to vector<16x128xbf16>
    %cst_31 = arith.constant dense<0.000000e+00> : vector<16x512xf32>
    %68 = tpu.matmul %67, %20, %cst_31 {dimension_numbers = #tpu.dot_dimension_numbers<[1], [0], [0], [1], [0, 0, 1, 1], [], []>} : vector<16x128xbf16>, vector<128x512xbf16>, vector<16x512xf32> -> vector<16x512xf32>
    %69 = arith.addf %66, %68 : vector<16x512xf32>
    %70 = vector.extract_strided_slice %69 {offsets = [0, 0], sizes = [16, 128], strides = [1, 1]} : vector<16x512xf32> to vector<16x128xf32>
    %cst_32 = arith.constant 5.000000e-01 : f32
    %71 = vector.broadcast %cst_32 : f32 to vector<16x128xf32>
    %72 = arith.mulf %71, %70 : vector<16x128xf32>
    %73 = math.tanh %72 : vector<16x128xf32>
    %cst_33 = arith.constant 1.000000e+00 : f32
    %74 = vector.broadcast %cst_33 : f32 to vector<16x128xf32>
    %75 = arith.addf %73, %74 : vector<16x128xf32>
    %cst_34 = arith.constant 5.000000e-01 : f32
    %76 = vector.broadcast %cst_34 : f32 to vector<16x128xf32>
    %77 = arith.mulf %76, %75 : vector<16x128xf32>
    %78 = vector.extract_strided_slice %69 {offsets = [0, 128], sizes = [16, 128], strides = [1, 1]} : vector<16x512xf32> to vector<16x128xf32>
    %cst_35 = arith.constant 5.000000e-01 : f32
    %79 = vector.broadcast %cst_35 : f32 to vector<16x128xf32>
    %80 = arith.mulf %79, %78 : vector<16x128xf32>
    %81 = math.tanh %80 : vector<16x128xf32>
    %cst_36 = arith.constant 1.000000e+00 : f32
    %82 = vector.broadcast %cst_36 : f32 to vector<16x128xf32>
    %83 = arith.addf %81, %82 : vector<16x128xf32>
    %cst_37 = arith.constant 5.000000e-01 : f32
    %84 = vector.broadcast %cst_37 : f32 to vector<16x128xf32>
    %85 = arith.mulf %84, %83 : vector<16x128xf32>
    %86 = vector.extract_strided_slice %69 {offsets = [0, 256], sizes = [16, 128], strides = [1, 1]} : vector<16x512xf32> to vector<16x128xf32>
    %87 = math.tanh %86 : vector<16x128xf32>
    %88 = vector.extract_strided_slice %69 {offsets = [0, 384], sizes = [16, 128], strides = [1, 1]} : vector<16x512xf32> to vector<16x128xf32>
    %cst_38 = arith.constant 5.000000e-01 : f32
    %89 = vector.broadcast %cst_38 : f32 to vector<16x128xf32>
    %90 = arith.mulf %89, %88 : vector<16x128xf32>
    %91 = math.tanh %90 : vector<16x128xf32>
    %cst_39 = arith.constant 1.000000e+00 : f32
    %92 = vector.broadcast %cst_39 : f32 to vector<16x128xf32>
    %93 = arith.addf %91, %92 : vector<16x128xf32>
    %cst_40 = arith.constant 5.000000e-01 : f32
    %94 = vector.broadcast %cst_40 : f32 to vector<16x128xf32>
    %95 = arith.mulf %94, %93 : vector<16x128xf32>
    %96 = arith.mulf %85, %59 : vector<16x128xf32>
    %97 = arith.mulf %77, %87 : vector<16x128xf32>
    %98 = arith.addf %96, %97 : vector<16x128xf32>
    %99 = math.tanh %98 : vector<16x128xf32>
    %100 = arith.mulf %95, %99 : vector<16x128xf32>
    %c2_i32 = arith.constant 2 : i32
    %c16_i32_41 = arith.constant 16 : i32
    %101 = arith.muli %c2_i32, %c16_i32_41 : i32
    %102 = tpu.assume_multiple %101, 16 : i32
    %103 = arith.index_cast %102 : i32 to index
    %c0_42 = arith.constant 0 : index
    %104 = vector.load %arg12[%103, %c0_42] : memref<128x512xbf16, #tpu.memory_space<vmem>>, vector<16x512xbf16>
    %105 = arith.extf %104 : vector<16x512xbf16> to vector<16x512xf32>
    %106 = arith.truncf %100 : vector<16x128xf32> to vector<16x128xbf16>
    %cst_43 = arith.constant dense<0.000000e+00> : vector<16x512xf32>
    %107 = tpu.matmul %106, %20, %cst_43 {dimension_numbers = #tpu.dot_dimension_numbers<[1], [0], [0], [1], [0, 0, 1, 1], [], []>} : vector<16x128xbf16>, vector<128x512xbf16>, vector<16x512xf32> -> vector<16x512xf32>
    %108 = arith.addf %105, %107 : vector<16x512xf32>
    %109 = vector.extract_strided_slice %108 {offsets = [0, 0], sizes = [16, 128], strides = [1, 1]} : vector<16x512xf32> to vector<16x128xf32>
    %cst_44 = arith.constant 5.000000e-01 : f32
    %110 = vector.broadcast %cst_44 : f32 to vector<16x128xf32>
    %111 = arith.mulf %110, %109 : vector<16x128xf32>
    %112 = math.tanh %111 : vector<16x128xf32>
    %cst_45 = arith.constant 1.000000e+00 : f32
    %113 = vector.broadcast %cst_45 : f32 to vector<16x128xf32>
    %114 = arith.addf %112, %113 : vector<16x128xf32>
    %cst_46 = arith.constant 5.000000e-01 : f32
    %115 = vector.broadcast %cst_46 : f32 to vector<16x128xf32>
    %116 = arith.mulf %115, %114 : vector<16x128xf32>
    %117 = vector.extract_strided_slice %108 {offsets = [0, 128], sizes = [16, 128], strides = [1, 1]} : vector<16x512xf32> to vector<16x128xf32>
    %cst_47 = arith.constant 5.000000e-01 : f32
    %118 = vector.broadcast %cst_47 : f32 to vector<16x128xf32>
    %119 = arith.mulf %118, %117 : vector<16x128xf32>
    %120 = math.tanh %119 : vector<16x128xf32>
    %cst_48 = arith.constant 1.000000e+00 : f32
    %121 = vector.broadcast %cst_48 : f32 to vector<16x128xf32>
    %122 = arith.addf %120, %121 : vector<16x128xf32>
    %cst_49 = arith.constant 5.000000e-01 : f32
    %123 = vector.broadcast %cst_49 : f32 to vector<16x128xf32>
    %124 = arith.mulf %123, %122 : vector<16x128xf32>
    %125 = vector.extract_strided_slice %108 {offsets = [0, 256], sizes = [16, 128], strides = [1, 1]} : vector<16x512xf32> to vector<16x128xf32>
    %126 = math.tanh %125 : vector<16x128xf32>
    %127 = vector.extract_strided_slice %108 {offsets = [0, 384], sizes = [16, 128], strides = [1, 1]} : vector<16x512xf32> to vector<16x128xf32>
    %cst_50 = arith.constant 5.000000e-01 : f32
    %128 = vector.broadcast %cst_50 : f32 to vector<16x128xf32>
    %129 = arith.mulf %128, %127 : vector<16x128xf32>
    %130 = math.tanh %129 : vector<16x128xf32>
    %cst_51 = arith.constant 1.000000e+00 : f32
    %131 = vector.broadcast %cst_51 : f32 to vector<16x128xf32>
    %132 = arith.addf %130, %131 : vector<16x128xf32>
    %cst_52 = arith.constant 5.000000e-01 : f32
    %133 = vector.broadcast %cst_52 : f32 to vector<16x128xf32>
    %134 = arith.mulf %133, %132 : vector<16x128xf32>
    %135 = arith.mulf %124, %98 : vector<16x128xf32>
    %136 = arith.mulf %116, %126 : vector<16x128xf32>
    %137 = arith.addf %135, %136 : vector<16x128xf32>
    %138 = math.tanh %137 : vector<16x128xf32>
    %139 = arith.mulf %134, %138 : vector<16x128xf32>
    %c3_i32 = arith.constant 3 : i32
    %c16_i32_53 = arith.constant 16 : i32
    %140 = arith.muli %c3_i32, %c16_i32_53 : i32
    %141 = tpu.assume_multiple %140, 16 : i32
    %142 = arith.index_cast %141 : i32 to index
    %c0_54 = arith.constant 0 : index
    %143 = vector.load %arg12[%142, %c0_54] : memref<128x512xbf16, #tpu.memory_space<vmem>>, vector<16x512xbf16>
    %144 = arith.extf %143 : vector<16x512xbf16> to vector<16x512xf32>
    %145 = arith.truncf %139 : vector<16x128xf32> to vector<16x128xbf16>
    %cst_55 = arith.constant dense<0.000000e+00> : vector<16x512xf32>
    %146 = tpu.matmul %145, %20, %cst_55 {dimension_numbers = #tpu.dot_dimension_numbers<[1], [0], [0], [1], [0, 0, 1, 1], [], []>} : vector<16x128xbf16>, vector<128x512xbf16>, vector<16x512xf32> -> vector<16x512xf32>
    %147 = arith.addf %144, %146 : vector<16x512xf32>
    %148 = vector.extract_strided_slice %147 {offsets = [0, 0], sizes = [16, 128], strides = [1, 1]} : vector<16x512xf32> to vector<16x128xf32>
    %cst_56 = arith.constant 5.000000e-01 : f32
    %149 = vector.broadcast %cst_56 : f32 to vector<16x128xf32>
    %150 = arith.mulf %149, %148 : vector<16x128xf32>
    %151 = math.tanh %150 : vector<16x128xf32>
    %cst_57 = arith.constant 1.000000e+00 : f32
    %152 = vector.broadcast %cst_57 : f32 to vector<16x128xf32>
    %153 = arith.addf %151, %152 : vector<16x128xf32>
    %cst_58 = arith.constant 5.000000e-01 : f32
    %154 = vector.broadcast %cst_58 : f32 to vector<16x128xf32>
    %155 = arith.mulf %154, %153 : vector<16x128xf32>
    %156 = vector.extract_strided_slice %147 {offsets = [0, 128], sizes = [16, 128], strides = [1, 1]} : vector<16x512xf32> to vector<16x128xf32>
    %cst_59 = arith.constant 5.000000e-01 : f32
    %157 = vector.broadcast %cst_59 : f32 to vector<16x128xf32>
    %158 = arith.mulf %157, %156 : vector<16x128xf32>
    %159 = math.tanh %158 : vector<16x128xf32>
    %cst_60 = arith.constant 1.000000e+00 : f32
    %160 = vector.broadcast %cst_60 : f32 to vector<16x128xf32>
    %161 = arith.addf %159, %160 : vector<16x128xf32>
    %cst_61 = arith.constant 5.000000e-01 : f32
    %162 = vector.broadcast %cst_61 : f32 to vector<16x128xf32>
    %163 = arith.mulf %162, %161 : vector<16x128xf32>
    %164 = vector.extract_strided_slice %147 {offsets = [0, 256], sizes = [16, 128], strides = [1, 1]} : vector<16x512xf32> to vector<16x128xf32>
    %165 = math.tanh %164 : vector<16x128xf32>
    %166 = vector.extract_strided_slice %147 {offsets = [0, 384], sizes = [16, 128], strides = [1, 1]} : vector<16x512xf32> to vector<16x128xf32>
    %cst_62 = arith.constant 5.000000e-01 : f32
    %167 = vector.broadcast %cst_62 : f32 to vector<16x128xf32>
    %168 = arith.mulf %167, %166 : vector<16x128xf32>
    %169 = math.tanh %168 : vector<16x128xf32>
    %cst_63 = arith.constant 1.000000e+00 : f32
    %170 = vector.broadcast %cst_63 : f32 to vector<16x128xf32>
    %171 = arith.addf %169, %170 : vector<16x128xf32>
    %cst_64 = arith.constant 5.000000e-01 : f32
    %172 = vector.broadcast %cst_64 : f32 to vector<16x128xf32>
    %173 = arith.mulf %172, %171 : vector<16x128xf32>
    %174 = arith.mulf %163, %137 : vector<16x128xf32>
    %175 = arith.mulf %155, %165 : vector<16x128xf32>
    %176 = arith.addf %174, %175 : vector<16x128xf32>
    %177 = math.tanh %176 : vector<16x128xf32>
    %178 = arith.mulf %173, %177 : vector<16x128xf32>
    %c4_i32 = arith.constant 4 : i32
    %c16_i32_65 = arith.constant 16 : i32
    %179 = arith.muli %c4_i32, %c16_i32_65 : i32
    %180 = tpu.assume_multiple %179, 16 : i32
    %181 = arith.index_cast %180 : i32 to index
    %c0_66 = arith.constant 0 : index
    %182 = vector.load %arg12[%181, %c0_66] : memref<128x512xbf16, #tpu.memory_space<vmem>>, vector<16x512xbf16>
    %183 = arith.extf %182 : vector<16x512xbf16> to vector<16x512xf32>
    %184 = arith.truncf %178 : vector<16x128xf32> to vector<16x128xbf16>
    %cst_67 = arith.constant dense<0.000000e+00> : vector<16x512xf32>
    %185 = tpu.matmul %184, %20, %cst_67 {dimension_numbers = #tpu.dot_dimension_numbers<[1], [0], [0], [1], [0, 0, 1, 1], [], []>} : vector<16x128xbf16>, vector<128x512xbf16>, vector<16x512xf32> -> vector<16x512xf32>
    %186 = arith.addf %183, %185 : vector<16x512xf32>
    %187 = vector.extract_strided_slice %186 {offsets = [0, 0], sizes = [16, 128], strides = [1, 1]} : vector<16x512xf32> to vector<16x128xf32>
    %cst_68 = arith.constant 5.000000e-01 : f32
    %188 = vector.broadcast %cst_68 : f32 to vector<16x128xf32>
    %189 = arith.mulf %188, %187 : vector<16x128xf32>
    %190 = math.tanh %189 : vector<16x128xf32>
    %cst_69 = arith.constant 1.000000e+00 : f32
    %191 = vector.broadcast %cst_69 : f32 to vector<16x128xf32>
    %192 = arith.addf %190, %191 : vector<16x128xf32>
    %cst_70 = arith.constant 5.000000e-01 : f32
    %193 = vector.broadcast %cst_70 : f32 to vector<16x128xf32>
    %194 = arith.mulf %193, %192 : vector<16x128xf32>
    %195 = vector.extract_strided_slice %186 {offsets = [0, 128], sizes = [16, 128], strides = [1, 1]} : vector<16x512xf32> to vector<16x128xf32>
    %cst_71 = arith.constant 5.000000e-01 : f32
    %196 = vector.broadcast %cst_71 : f32 to vector<16x128xf32>
    %197 = arith.mulf %196, %195 : vector<16x128xf32>
    %198 = math.tanh %197 : vector<16x128xf32>
    %cst_72 = arith.constant 1.000000e+00 : f32
    %199 = vector.broadcast %cst_72 : f32 to vector<16x128xf32>
    %200 = arith.addf %198, %199 : vector<16x128xf32>
    %cst_73 = arith.constant 5.000000e-01 : f32
    %201 = vector.broadcast %cst_73 : f32 to vector<16x128xf32>
    %202 = arith.mulf %201, %200 : vector<16x128xf32>
    %203 = vector.extract_strided_slice %186 {offsets = [0, 256], sizes = [16, 128], strides = [1, 1]} : vector<16x512xf32> to vector<16x128xf32>
    %204 = math.tanh %203 : vector<16x128xf32>
    %205 = vector.extract_strided_slice %186 {offsets = [0, 384], sizes = [16, 128], strides = [1, 1]} : vector<16x512xf32> to vector<16x128xf32>
    %cst_74 = arith.constant 5.000000e-01 : f32
    %206 = vector.broadcast %cst_74 : f32 to vector<16x128xf32>
    %207 = arith.mulf %206, %205 : vector<16x128xf32>
    %208 = math.tanh %207 : vector<16x128xf32>
    %cst_75 = arith.constant 1.000000e+00 : f32
    %209 = vector.broadcast %cst_75 : f32 to vector<16x128xf32>
    %210 = arith.addf %208, %209 : vector<16x128xf32>
    %cst_76 = arith.constant 5.000000e-01 : f32
    %211 = vector.broadcast %cst_76 : f32 to vector<16x128xf32>
    %212 = arith.mulf %211, %210 : vector<16x128xf32>
    %213 = arith.mulf %202, %176 : vector<16x128xf32>
    %214 = arith.mulf %194, %204 : vector<16x128xf32>
    %215 = arith.addf %213, %214 : vector<16x128xf32>
    %216 = math.tanh %215 : vector<16x128xf32>
    %217 = arith.mulf %212, %216 : vector<16x128xf32>
    %c5_i32 = arith.constant 5 : i32
    %c16_i32_77 = arith.constant 16 : i32
    %218 = arith.muli %c5_i32, %c16_i32_77 : i32
    %219 = tpu.assume_multiple %218, 16 : i32
    %220 = arith.index_cast %219 : i32 to index
    %c0_78 = arith.constant 0 : index
    %221 = vector.load %arg12[%220, %c0_78] : memref<128x512xbf16, #tpu.memory_space<vmem>>, vector<16x512xbf16>
    %222 = arith.extf %221 : vector<16x512xbf16> to vector<16x512xf32>
    %223 = arith.truncf %217 : vector<16x128xf32> to vector<16x128xbf16>
    %cst_79 = arith.constant dense<0.000000e+00> : vector<16x512xf32>
    %224 = tpu.matmul %223, %20, %cst_79 {dimension_numbers = #tpu.dot_dimension_numbers<[1], [0], [0], [1], [0, 0, 1, 1], [], []>} : vector<16x128xbf16>, vector<128x512xbf16>, vector<16x512xf32> -> vector<16x512xf32>
    %225 = arith.addf %222, %224 : vector<16x512xf32>
    %226 = vector.extract_strided_slice %225 {offsets = [0, 0], sizes = [16, 128], strides = [1, 1]} : vector<16x512xf32> to vector<16x128xf32>
    %cst_80 = arith.constant 5.000000e-01 : f32
    %227 = vector.broadcast %cst_80 : f32 to vector<16x128xf32>
    %228 = arith.mulf %227, %226 : vector<16x128xf32>
    %229 = math.tanh %228 : vector<16x128xf32>
    %cst_81 = arith.constant 1.000000e+00 : f32
    %230 = vector.broadcast %cst_81 : f32 to vector<16x128xf32>
    %231 = arith.addf %229, %230 : vector<16x128xf32>
    %cst_82 = arith.constant 5.000000e-01 : f32
    %232 = vector.broadcast %cst_82 : f32 to vector<16x128xf32>
    %233 = arith.mulf %232, %231 : vector<16x128xf32>
    %234 = vector.extract_strided_slice %225 {offsets = [0, 128], sizes = [16, 128], strides = [1, 1]} : vector<16x512xf32> to vector<16x128xf32>
    %cst_83 = arith.constant 5.000000e-01 : f32
    %235 = vector.broadcast %cst_83 : f32 to vector<16x128xf32>
    %236 = arith.mulf %235, %234 : vector<16x128xf32>
    %237 = math.tanh %236 : vector<16x128xf32>
    %cst_84 = arith.constant 1.000000e+00 : f32
    %238 = vector.broadcast %cst_84 : f32 to vector<16x128xf32>
    %239 = arith.addf %237, %238 : vector<16x128xf32>
    %cst_85 = arith.constant 5.000000e-01 : f32
    %240 = vector.broadcast %cst_85 : f32 to vector<16x128xf32>
    %241 = arith.mulf %240, %239 : vector<16x128xf32>
    %242 = vector.extract_strided_slice %225 {offsets = [0, 256], sizes = [16, 128], strides = [1, 1]} : vector<16x512xf32> to vector<16x128xf32>
    %243 = math.tanh %242 : vector<16x128xf32>
    %244 = vector.extract_strided_slice %225 {offsets = [0, 384], sizes = [16, 128], strides = [1, 1]} : vector<16x512xf32> to vector<16x128xf32>
    %cst_86 = arith.constant 5.000000e-01 : f32
    %245 = vector.broadcast %cst_86 : f32 to vector<16x128xf32>
    %246 = arith.mulf %245, %244 : vector<16x128xf32>
    %247 = math.tanh %246 : vector<16x128xf32>
    %cst_87 = arith.constant 1.000000e+00 : f32
    %248 = vector.broadcast %cst_87 : f32 to vector<16x128xf32>
    %249 = arith.addf %247, %248 : vector<16x128xf32>
    %cst_88 = arith.constant 5.000000e-01 : f32
    %250 = vector.broadcast %cst_88 : f32 to vector<16x128xf32>
    %251 = arith.mulf %250, %249 : vector<16x128xf32>
    %252 = arith.mulf %241, %215 : vector<16x128xf32>
    %253 = arith.mulf %233, %243 : vector<16x128xf32>
    %254 = arith.addf %252, %253 : vector<16x128xf32>
    %255 = math.tanh %254 : vector<16x128xf32>
    %256 = arith.mulf %251, %255 : vector<16x128xf32>
    %c6_i32 = arith.constant 6 : i32
    %c16_i32_89 = arith.constant 16 : i32
    %257 = arith.muli %c6_i32, %c16_i32_89 : i32
    %258 = tpu.assume_multiple %257, 16 : i32
    %259 = arith.index_cast %258 : i32 to index
    %c0_90 = arith.constant 0 : index
    %260 = vector.load %arg12[%259, %c0_90] : memref<128x512xbf16, #tpu.memory_space<vmem>>, vector<16x512xbf16>
    %261 = arith.extf %260 : vector<16x512xbf16> to vector<16x512xf32>
    %262 = arith.truncf %256 : vector<16x128xf32> to vector<16x128xbf16>
    %cst_91 = arith.constant dense<0.000000e+00> : vector<16x512xf32>
    %263 = tpu.matmul %262, %20, %cst_91 {dimension_numbers = #tpu.dot_dimension_numbers<[1], [0], [0], [1], [0, 0, 1, 1], [], []>} : vector<16x128xbf16>, vector<128x512xbf16>, vector<16x512xf32> -> vector<16x512xf32>
    %264 = arith.addf %261, %263 : vector<16x512xf32>
    %265 = vector.extract_strided_slice %264 {offsets = [0, 0], sizes = [16, 128], strides = [1, 1]} : vector<16x512xf32> to vector<16x128xf32>
    %cst_92 = arith.constant 5.000000e-01 : f32
    %266 = vector.broadcast %cst_92 : f32 to vector<16x128xf32>
    %267 = arith.mulf %266, %265 : vector<16x128xf32>
    %268 = math.tanh %267 : vector<16x128xf32>
    %cst_93 = arith.constant 1.000000e+00 : f32
    %269 = vector.broadcast %cst_93 : f32 to vector<16x128xf32>
    %270 = arith.addf %268, %269 : vector<16x128xf32>
    %cst_94 = arith.constant 5.000000e-01 : f32
    %271 = vector.broadcast %cst_94 : f32 to vector<16x128xf32>
    %272 = arith.mulf %271, %270 : vector<16x128xf32>
    %273 = vector.extract_strided_slice %264 {offsets = [0, 128], sizes = [16, 128], strides = [1, 1]} : vector<16x512xf32> to vector<16x128xf32>
    %cst_95 = arith.constant 5.000000e-01 : f32
    %274 = vector.broadcast %cst_95 : f32 to vector<16x128xf32>
    %275 = arith.mulf %274, %273 : vector<16x128xf32>
    %276 = math.tanh %275 : vector<16x128xf32>
    %cst_96 = arith.constant 1.000000e+00 : f32
    %277 = vector.broadcast %cst_96 : f32 to vector<16x128xf32>
    %278 = arith.addf %276, %277 : vector<16x128xf32>
    %cst_97 = arith.constant 5.000000e-01 : f32
    %279 = vector.broadcast %cst_97 : f32 to vector<16x128xf32>
    %280 = arith.mulf %279, %278 : vector<16x128xf32>
    %281 = vector.extract_strided_slice %264 {offsets = [0, 256], sizes = [16, 128], strides = [1, 1]} : vector<16x512xf32> to vector<16x128xf32>
    %282 = math.tanh %281 : vector<16x128xf32>
    %283 = vector.extract_strided_slice %264 {offsets = [0, 384], sizes = [16, 128], strides = [1, 1]} : vector<16x512xf32> to vector<16x128xf32>
    %cst_98 = arith.constant 5.000000e-01 : f32
    %284 = vector.broadcast %cst_98 : f32 to vector<16x128xf32>
    %285 = arith.mulf %284, %283 : vector<16x128xf32>
    %286 = math.tanh %285 : vector<16x128xf32>
    %cst_99 = arith.constant 1.000000e+00 : f32
    %287 = vector.broadcast %cst_99 : f32 to vector<16x128xf32>
    %288 = arith.addf %286, %287 : vector<16x128xf32>
    %cst_100 = arith.constant 5.000000e-01 : f32
    %289 = vector.broadcast %cst_100 : f32 to vector<16x128xf32>
    %290 = arith.mulf %289, %288 : vector<16x128xf32>
    %291 = arith.mulf %280, %254 : vector<16x128xf32>
    %292 = arith.mulf %272, %282 : vector<16x128xf32>
    %293 = arith.addf %291, %292 : vector<16x128xf32>
    %294 = math.tanh %293 : vector<16x128xf32>
    %295 = arith.mulf %290, %294 : vector<16x128xf32>
    %c7_i32 = arith.constant 7 : i32
    %c16_i32_101 = arith.constant 16 : i32
    %296 = arith.muli %c7_i32, %c16_i32_101 : i32
    %297 = tpu.assume_multiple %296, 16 : i32
    %298 = arith.index_cast %297 : i32 to index
    %c0_102 = arith.constant 0 : index
    %299 = vector.load %arg12[%298, %c0_102] : memref<128x512xbf16, #tpu.memory_space<vmem>>, vector<16x512xbf16>
    %300 = arith.extf %299 : vector<16x512xbf16> to vector<16x512xf32>
    %301 = arith.truncf %295 : vector<16x128xf32> to vector<16x128xbf16>
    %cst_103 = arith.constant dense<0.000000e+00> : vector<16x512xf32>
    %302 = tpu.matmul %301, %20, %cst_103 {dimension_numbers = #tpu.dot_dimension_numbers<[1], [0], [0], [1], [0, 0, 1, 1], [], []>} : vector<16x128xbf16>, vector<128x512xbf16>, vector<16x512xf32> -> vector<16x512xf32>
    %303 = arith.addf %300, %302 : vector<16x512xf32>
    %304 = vector.extract_strided_slice %303 {offsets = [0, 0], sizes = [16, 128], strides = [1, 1]} : vector<16x512xf32> to vector<16x128xf32>
    %cst_104 = arith.constant 5.000000e-01 : f32
    %305 = vector.broadcast %cst_104 : f32 to vector<16x128xf32>
    %306 = arith.mulf %305, %304 : vector<16x128xf32>
    %307 = math.tanh %306 : vector<16x128xf32>
    %cst_105 = arith.constant 1.000000e+00 : f32
    %308 = vector.broadcast %cst_105 : f32 to vector<16x128xf32>
    %309 = arith.addf %307, %308 : vector<16x128xf32>
    %cst_106 = arith.constant 5.000000e-01 : f32
    %310 = vector.broadcast %cst_106 : f32 to vector<16x128xf32>
    %311 = arith.mulf %310, %309 : vector<16x128xf32>
    %312 = vector.extract_strided_slice %303 {offsets = [0, 128], sizes = [16, 128], strides = [1, 1]} : vector<16x512xf32> to vector<16x128xf32>
    %cst_107 = arith.constant 5.000000e-01 : f32
    %313 = vector.broadcast %cst_107 : f32 to vector<16x128xf32>
    %314 = arith.mulf %313, %312 : vector<16x128xf32>
    %315 = math.tanh %314 : vector<16x128xf32>
    %cst_108 = arith.constant 1.000000e+00 : f32
    %316 = vector.broadcast %cst_108 : f32 to vector<16x128xf32>
    %317 = arith.addf %315, %316 : vector<16x128xf32>
    %cst_109 = arith.constant 5.000000e-01 : f32
    %318 = vector.broadcast %cst_109 : f32 to vector<16x128xf32>
    %319 = arith.mulf %318, %317 : vector<16x128xf32>
    %320 = vector.extract_strided_slice %303 {offsets = [0, 256], sizes = [16, 128], strides = [1, 1]} : vector<16x512xf32> to vector<16x128xf32>
    %321 = math.tanh %320 : vector<16x128xf32>
    %322 = vector.extract_strided_slice %303 {offsets = [0, 384], sizes = [16, 128], strides = [1, 1]} : vector<16x512xf32> to vector<16x128xf32>
    %cst_110 = arith.constant 5.000000e-01 : f32
    %323 = vector.broadcast %cst_110 : f32 to vector<16x128xf32>
    %324 = arith.mulf %323, %322 : vector<16x128xf32>
    %325 = math.tanh %324 : vector<16x128xf32>
    %cst_111 = arith.constant 1.000000e+00 : f32
    %326 = vector.broadcast %cst_111 : f32 to vector<16x128xf32>
    %327 = arith.addf %325, %326 : vector<16x128xf32>
    %cst_112 = arith.constant 5.000000e-01 : f32
    %328 = vector.broadcast %cst_112 : f32 to vector<16x128xf32>
    %329 = arith.mulf %328, %327 : vector<16x128xf32>
    %330 = arith.mulf %319, %293 : vector<16x128xf32>
    %331 = arith.mulf %311, %321 : vector<16x128xf32>
    %332 = arith.addf %330, %331 : vector<16x128xf32>
    %333 = math.tanh %332 : vector<16x128xf32>
    %334 = arith.mulf %329, %333 : vector<16x128xf32>
    %c8_i32 = arith.constant 8 : i32
    %c0_113 = arith.constant 0 : index
    %c0_114 = arith.constant 0 : index
    %335 = vector.load %arg10[%c0_113, %c0_114] : memref<16x128xf32, #tpu.memory_space<vmem>>, vector<16x128xf32>
    tpu.vector_store %arg10[%c0_113, %c0_114], %334 {strides = array<i32>} : memref<16x128xf32, #tpu.memory_space<vmem>>, vector<16x128xf32>,
    %c0_115 = arith.constant 0 : index
    %c0_116 = arith.constant 0 : index
    %336 = vector.load %arg11[%c0_115, %c0_116] : memref<16x128xf32, #tpu.memory_space<vmem>>, vector<16x128xf32>
    tpu.vector_store %arg11[%c0_115, %c0_116], %332 {strides = array<i32>} : memref<16x128xf32, #tpu.memory_space<vmem>>, vector<16x128xf32>,
    %c0_i32_117 = arith.constant 0 : i32
    %337 = arith.cmpi eq, %arg1, %c0_i32_117 : i32
    %338 = arith.extui %337 : i1 to i32
    %c0_i32_118 = arith.constant 0 : i32
    %339 = arith.cmpi ne, %338, %c0_i32_118 : i32
    scf.if %339 {
      %340 = arith.truncf %334 : vector<16x128xf32> to vector<16x128xbf16>
      %c0_119 = arith.constant 0 : index
      %c0_120 = arith.constant 0 : index
      %341 = vector.load %arg7[%c0_119, %c0_120] : memref<128x128xbf16, #tpu.memory_space<vmem>>, vector<128x128xbf16>
      %cst_121 = arith.constant dense<0.000000e+00> : vector<16x128xf32>
      %342 = tpu.matmul %340, %341, %cst_121 {dimension_numbers = #tpu.dot_dimension_numbers<[1], [0], [0], [1], [0, 0, 1, 1], [], []>} : vector<16x128xbf16>, vector<128x128xbf16>, vector<16x128xf32> -> vector<16x128xf32>
      %c0_122 = arith.constant 0 : index
      %c0_123 = arith.constant 0 : index
      %343 = vector.load %arg8[%c0_122, %c0_123] : memref<1x128xf32, #tpu.memory_space<vmem>>, vector<1x128xf32>
      %344 = vector.broadcast %343 : vector<1x128xf32> to vector<16x128xf32>
      %345 = arith.addf %342, %344 : vector<16x128xf32>
      %cst_124 = arith.constant 5.000000e-01 : f32
      %346 = vector.broadcast %cst_124 : f32 to vector<16x128xf32>
      %347 = arith.mulf %346, %345 : vector<16x128xf32>
      %348 = math.tanh %347 : vector<16x128xf32>
      %cst_125 = arith.constant 1.000000e+00 : f32
      %349 = vector.broadcast %cst_125 : f32 to vector<16x128xf32>
      %350 = arith.addf %348, %349 : vector<16x128xf32>
      %cst_126 = arith.constant 5.000000e-01 : f32
      %351 = vector.broadcast %cst_126 : f32 to vector<16x128xf32>
      %352 = arith.mulf %351, %350 : vector<16x128xf32>
      %c0_127 = arith.constant 0 : index
      %c0_128 = arith.constant 0 : index
      %353 = vector.load %arg9[%c0_127, %c0_128] : memref<16x128xf32, #tpu.memory_space<vmem>>, vector<16x128xf32>
      tpu.vector_store %arg9[%c0_127, %c0_128], %352 {strides = array<i32>} : memref<16x128xf32, #tpu.memory_space<vmem>>, vector<16x128xf32>,
    } else {
    }
    return
  }
  func.func @transform_0(%arg0: i32, %arg1: i32) -> (i32, i32) {
    %c1_i32 = arith.constant 1 : i32
    %0 = arith.muli %arg0, %c1_i32 : i32
    %1 = arith.addi %0, %arg1 : i32
    %c0_i32 = arith.constant 0 : i32
    %c0_i32_0 = arith.constant 0 : i32
    return %1, %c0_i32 : i32, i32
  }
  func.func @transform_1(%arg0: i32, %arg1: i32) -> (i32, i32) {
    %c0_i32 = arith.constant 0 : i32
    %c0_i32_0 = arith.constant 0 : i32
    %c0_i32_1 = arith.constant 0 : i32
    return %c0_i32, %c0_i32_0 : i32, i32
  }
  func.func @transform_2(%arg0: i32, %arg1: i32) -> (i32, i32) {
    %c0_i32 = arith.constant 0 : i32
    %c0_i32_0 = arith.constant 0 : i32
    %c0_i32_1 = arith.constant 0 : i32
    return %c0_i32, %c0_i32_0 : i32, i32
  }
  func.func @transform_3(%arg0: i32, %arg1: i32) -> (i32, i32) {
    %c0_i32 = arith.constant 0 : i32
    %c0_i32_0 = arith.constant 0 : i32
    %c0_i32_1 = arith.constant 0 : i32
    return %c0_i32, %c0_i32_0 : i32, i32
  }
  func.func @transform_4(%arg0: i32, %arg1: i32) -> (i32, i32) {
    %c0_i32 = arith.constant 0 : i32
    %c0_i32_0 = arith.constant 0 : i32
    %c0_i32_1 = arith.constant 0 : i32
    return %c0_i32, %c0_i32_0 : i32, i32
  }
  func.func @transform_5(%arg0: i32, %arg1: i32) -> (i32, i32) {
    %c0_i32 = arith.constant 0 : i32
    %c0_i32_0 = arith.constant 0 : i32
    %c0_i32_1 = arith.constant 0 : i32
    return %c0_i32, %c0_i32_0 : i32, i32
  }
  func.func @transform_6(%arg0: i32, %arg1: i32) -> (i32, i32) {
    %c0_i32 = arith.constant 0 : i32
    %c0_i32_0 = arith.constant 0 : i32
    %c0_i32_1 = arith.constant 0 : i32
    return %c0_i32, %c0_i32_0 : i32, i32
  }
  func.func @transform_7(%arg0: i32, %arg1: i32) -> (i32, i32) {
    %c0_i32 = arith.constant 0 : i32
    %c0_i32_0 = arith.constant 0 : i32
    return %arg0, %c0_i32 : i32, i32
  }
}

</mosaic_0001>

<llo_original>
// kernel: tpu_custom_call.1
$region0: #{tpu_custom_call.1}
  #allocation0 [shape = 'u32[]', space=smem, size = 0x4, offset = 0x4, fixed_abs, tag = 'smem constant byte address 0x4 - core index']
  #allocation1 [shape = 'u32[144,128]{1,0:T(1,128)}', space=vmem, size = 0x12000, scoped, tag = 'internal scratch']
  #allocation2 [shape = 'f32[16,128]{1,0:T(8,128)}', space=vmem, size = 0x2000, scoped, tag = 'scratch operand']
  #allocation3 [shape = 'f32[16,128]{1,0:T(8,128)}', space=vmem, size = 0x2000, scoped, tag = 'scratch operand']
  #allocation4 [shape = 'bf16[128,512]{1,0:T(16,128)(2,1)}', space=vmem, size = 0x20000, scoped, tag = 'scratch operand']
  %s0 = inlined_call_operand.vmem [shape: s32[128,1], index: 0, kind: input, shape index: {}]
  %s1 = inlined_call_operand.vmem [shape: bf16[128,64], index: 1, kind: input, shape index: {}]
  %s2 = inlined_call_operand.vmem [shape: bf16[64,512], index: 2, kind: input, shape index: {}]
  %s3 = inlined_call_operand.hbm [shape: bf16[128,512], index: 3, kind: input, shape index: {}]
  %s4 = inlined_call_operand.vmem [shape: f32[1,512], index: 4, kind: input, shape index: {}]
  %s5 = inlined_call_operand.vmem [shape: bf16[128,128], index: 5, kind: input, shape index: {}]
  %s6 = inlined_call_operand.vmem [shape: f32[1,128], index: 6, kind: input, shape index: {}]
  %s7 = inlined_call_operand.hbm [shape: f32[16,128], index: 7, kind: output, shape index: {}]
  %s8 = sld [smem:[#allocation0]]
  $region50: #{tpu_custom_call.1} parent=0
    _
  %s10 = ssub.s32 1, %s8
  %s11 = scalar_select 0, %s10, %s8
  $region1: #{tpu_custom_call.1} parent=0
    #allocation5 [shape = 'u8[131072]{0}', space=vmem, size = 0x20000, scoped, tag = 'input window, operand 3, single buffered']
    #allocation6 [shape = 's32[1]{0}', space=sflag, size = 0x4, scoped, tag = 'scoped memory for tpu_custom_call.1']
    #allocation7 [shape = 's32[1]{0}', space=sflag, size = 0x4, scoped, tag = 'scoped memory for tpu_custom_call.1']
    #allocation8 [shape = 'u8[8192]{0}', space=vmem, size = 0x2000, scoped, tag = 'output window, operand 0, single buffered']
    %12 = vsyncpa [#allocation6], 0
    %13 = vsyncpa [#allocation7], 0
    // Predicated region
    $region2: #{tpu_custom_call.1} parent=1 // pred_check
      _
    $region3: #{tpu_custom_call.1} parent=1 // pred_check_branch
      %15 = sbr.rel (0) target = $region5
    $region4: #{tpu_custom_call.1} parent=1 // pred_region
      %s16 = sadd.s32 0, 0
      %s17 = smul.u32 16, %s16
      %p18 = scmp.lt.s32.totalorder %s17, 15
      %s19 = scalar_select %p18, %s17, 15
      %s20 = smul.addr %s19, 8
      %s21 = scalar_lea.vmem %s0, %s20
      %s22 = sadd.s32 0, 0
      %s23 = smul.u32 16, %s22
    $region5: #{tpu_custom_call.1} parent=1 // pred_fallthru
      _
    // Predicated region
    $region6: #{tpu_custom_call.1} parent=1 // pred_check
      _
    $region7: #{tpu_custom_call.1} parent=1 // pred_check_branch
      %25 = sbr.rel (0) target = $region9
    $region8: #{tpu_custom_call.1} parent=1 // pred_region
      _
    $region9: #{tpu_custom_call.1} parent=1 // pred_fallthru
      _
    // Predicated region
    $region10: #{tpu_custom_call.1} parent=1 // pred_check
      _
    $region11: #{tpu_custom_call.1} parent=1 // pred_check_branch
      %27 = sbr.rel (0) target = $region13
    $region12: #{tpu_custom_call.1} parent=1 // pred_region
      _
    $region13: #{tpu_custom_call.1} parent=1 // pred_fallthru
      _
    // Predicated region
    $region14: #{tpu_custom_call.1} parent=1 // pred_check
      _
    $region15: #{tpu_custom_call.1} parent=1 // pred_check_branch
      %29 = sbr.rel (0) target = $region17
    $region16: #{tpu_custom_call.1} parent=1 // pred_region
      %s31 = ssub.s32 4096, 4096
      %32 = vsyncadd [#allocation6], %s31
      %s33 = sshll.u32 [#allocation5], 4
      %s34 = int_to_ptr.vmem [resolvable:$true] %s33
      %39 = dma.hbm_to_vmem [thread:$0]  %s3, 4096, %s34, [#allocation6], 256, 256, 16
    $region17: #{tpu_custom_call.1} parent=1 // pred_fallthru
      _
    // Predicated region
    $region18: #{tpu_custom_call.1} parent=1 // pred_check
      _
    $region19: #{tpu_custom_call.1} parent=1 // pred_check_branch
      %41 = sbr.rel (0) target = $region21
    $region20: #{tpu_custom_call.1} parent=1 // pred_region
      _
    $region21: #{tpu_custom_call.1} parent=1 // pred_fallthru
      _
    // Predicated region
    $region22: #{tpu_custom_call.1} parent=1 // pred_check
      _
    $region23: #{tpu_custom_call.1} parent=1 // pred_check_branch
      %43 = sbr.rel (0) target = $region25
    $region24: #{tpu_custom_call.1} parent=1 // pred_region
      _
    $region25: #{tpu_custom_call.1} parent=1 // pred_fallthru
      _
    // Predicated region
    $region26: #{tpu_custom_call.1} parent=1 // pred_check
      _
    $region27: #{tpu_custom_call.1} parent=1 // pred_check_branch
      %45 = sbr.rel (0) target = $region29
    $region28: #{tpu_custom_call.1} parent=1 // pred_region
      _
    $region29: #{tpu_custom_call.1} parent=1 // pred_fallthru
      _
    // Predicated region
    $region30: #{tpu_custom_call.1} parent=1 // pred_check
      _
    $region31: #{tpu_custom_call.1} parent=1 // pred_check_branch
      %47 = sbr.rel (0) target = $region33
    $region32: #{tpu_custom_call.1} parent=1 // pred_region
      %48 = dma.done [#allocation6], 4096
    $region33: #{tpu_custom_call.1} parent=1 // pred_fallthru
      _
    %s49 = sadd.s32 0, 0
    %s50 = smul.u32 16, %s49
    %p51 = scmp.lt.s32.totalorder %s50, 15
    %s52 = scalar_select %p51, %s50, 15
    %s53 = smul.addr %s52, 8
    %s54 = scalar_lea.vmem %s0, %s53
    %s55 = sadd.s32 0, 0
    %s56 = smul.u32 16, %s55
    %p57 = scmp.lt.s32.totalorder %s56, 15
    %s58 = scalar_select %p57, %s56, 15
    %s59 = smul.addr %s58, 8
    %s60 = scalar_lea.vmem %s0, %s59
    %s61 = sadd.s32 0, 0
    %s62 = smul.u32 16, %s61
    %p64 = scmp.eq.s32.totalorder 0, 0
    // Predicated region
    $region34: #{tpu_custom_call.1} parent=1 // pred_check
      %p65 = pneg %p64
    $region35: #{tpu_custom_call.1} parent=1 // pred_check_branch
      %67 = sbr.rel (%p65) target = $region37
    $region36: #{tpu_custom_call.1} parent=1 // pred_region
      %68 = vst [vmem:[#allocation2] sm:$0xff] 0.0
      %69 = vst [vmem:[#allocation2 + $0x8] sm:$0xff] 0.0
      %70 = vst [vmem:[#allocation3] sm:$0xff] 0.0
      %71 = vst [vmem:[#allocation3 + $0x8] sm:$0xff] 0.0
    $region37: #{tpu_custom_call.1} parent=1 // pred_fallthru
      _
    %v72 = vld [vmem:[%s60] sm:$0xff]
    %v73 = vld [vmem:[%s60 + $0x8] sm:$0xff]
    %v74 = vld [vmem:[%s60 + $0x10] sm:$0xff]
    %v75 = vld [vmem:[%s60 + $0x18] sm:$0xff]
    %v76 = vld [vmem:[%s60 + $0x20] sm:$0xff]
    %v77 = vld [vmem:[%s60 + $0x28] sm:$0xff]
    %v78 = vld [vmem:[%s60 + $0x30] sm:$0xff]
    %v79 = vld [vmem:[%s60 + $0x38] sm:$0xff]
    %v80 = vld [vmem:[%s60 + $0x40] sm:$0xff]
    %v81 = vld [vmem:[%s60 + $0x48] sm:$0xff]
    %v82 = vld [vmem:[%s60 + $0x50] sm:$0xff]
    %v83 = vld [vmem:[%s60 + $0x58] sm:$0xff]
    %v84 = vld [vmem:[%s60 + $0x60] sm:$0xff]
    %v85 = vld [vmem:[%s60 + $0x68] sm:$0xff]
    %v86 = vld [vmem:[%s60 + $0x70] sm:$0xff]
    %v87 = vld [vmem:[%s60 + $0x78] sm:$0xff]
    %v88 = vlaneseq
    %v89 = vand.u32 %v88, 127
    %90 = vset.pattern.permute.xlu0 0
    %91 = vperm.xlu0 %90, %v72
    %v92 = vpop.permute.xlu0 %91
    %93 = vset.pattern.permute.xlu0 0
    %94 = vperm.xlu0 %93, %v73
    %v95 = vpop.permute.xlu0 %94
    %96 = vset.pattern.permute.xlu0 0
    %97 = vperm.xlu0 %96, %v74
    %v98 = vpop.permute.xlu0 %97
    %99 = vset.pattern.permute.xlu0 0
    %100 = vperm.xlu0 %99, %v75
    %v101 = vpop.permute.xlu0 %100
    %102 = vset.pattern.permute.xlu0 0
    %103 = vperm.xlu0 %102, %v76
    %v104 = vpop.permute.xlu0 %103
    %105 = vset.pattern.permute.xlu0 0
    %106 = vperm.xlu0 %105, %v77
    %v107 = vpop.permute.xlu0 %106
    %108 = vset.pattern.permute.xlu0 0
    %109 = vperm.xlu0 %108, %v78
    %v110 = vpop.permute.xlu0 %109
    %111 = vset.pattern.permute.xlu0 0
    %112 = vperm.xlu0 %111, %v79
    %v113 = vpop.permute.xlu0 %112
    %114 = vset.pattern.permute.xlu0 0
    %115 = vperm.xlu0 %114, %v80
    %v116 = vpop.permute.xlu0 %115
    %117 = vset.pattern.permute.xlu0 0
    %118 = vperm.xlu0 %117, %v81
    %v119 = vpop.permute.xlu0 %118
    %120 = vset.pattern.permute.xlu0 0
    %121 = vperm.xlu0 %120, %v82
    %v122 = vpop.permute.xlu0 %121
    %123 = vset.pattern.permute.xlu0 0
    %124 = vperm.xlu0 %123, %v83
    %v125 = vpop.permute.xlu0 %124
    %126 = vset.pattern.permute.xlu0 0
    %127 = vperm.xlu0 %126, %v84
    %v128 = vpop.permute.xlu0 %127
    %129 = vset.pattern.permute.xlu0 0
    %130 = vperm.xlu0 %129, %v85
    %v131 = vpop.permute.xlu0 %130
    %132 = vset.pattern.permute.xlu0 0
    %133 = vperm.xlu0 %132, %v86
    %v134 = vpop.permute.xlu0 %133
    %135 = vset.pattern.permute.xlu0 0
    %136 = vperm.xlu0 %135, %v87
    %v137 = vpop.permute.xlu0 %136
    %vm138 = vcmp.eq.s32.totalorder %v89, %v92
    %vm139 = vcmp.eq.s32.totalorder %v89, %v95
    %vm140 = vcmp.eq.s32.totalorder %v89, %v98
    %vm141 = vcmp.eq.s32.totalorder %v89, %v101
    %vm142 = vcmp.eq.s32.totalorder %v89, %v104
    %vm143 = vcmp.eq.s32.totalorder %v89, %v107
    %vm144 = vcmp.eq.s32.totalorder %v89, %v110
    %vm145 = vcmp.eq.s32.totalorder %v89, %v113
    %vm146 = vcmp.eq.s32.totalorder %v89, %v116
    %vm147 = vcmp.eq.s32.totalorder %v89, %v119
    %vm148 = vcmp.eq.s32.totalorder %v89, %v122
    %vm149 = vcmp.eq.s32.totalorder %v89, %v125
    %vm150 = vcmp.eq.s32.totalorder %v89, %v128
    %vm151 = vcmp.eq.s32.totalorder %v89, %v131
    %vm152 = vcmp.eq.s32.totalorder %v89, %v134
    %vm153 = vcmp.eq.s32.totalorder %v89, %v137
    %v154 = vsel %vm138, 1, 0
    %v155 = vsel %vm139, 1, 0
    %v156 = vsel %vm140, 1, 0
    %v157 = vsel %vm141, 1, 0
    %v158 = vsel %vm142, 1, 0
    %v159 = vsel %vm143, 1, 0
    %v160 = vsel %vm144, 1, 0
    %v161 = vsel %vm145, 1, 0
    %v162 = vsel %vm146, 1, 0
    %v163 = vsel %vm147, 1, 0
    %v164 = vsel %vm148, 1, 0
    %v165 = vsel %vm149, 1, 0
    %v166 = vsel %vm150, 1, 0
    %v167 = vsel %vm151, 1, 0
    %v168 = vsel %vm152, 1, 0
    %v169 = vsel %vm153, 1, 0
    %v170 = vcvt.s32.f32 %v154
    %v171 = vcvt.s32.f32 %v155
    %v172 = vcvt.s32.f32 %v156
    %v173 = vcvt.s32.f32 %v157
    %v174 = vcvt.s32.f32 %v158
    %v175 = vcvt.s32.f32 %v159
    %v176 = vcvt.s32.f32 %v160
    %v177 = vcvt.s32.f32 %v161
    %v178 = vcvt.s32.f32 %v162
    %v179 = vcvt.s32.f32 %v163
    %v180 = vcvt.s32.f32 %v164
    %v181 = vcvt.s32.f32 %v165
    %v182 = vcvt.s32.f32 %v166
    %v183 = vcvt.s32.f32 %v167
    %v184 = vcvt.s32.f32 %v168
    %v185 = vcvt.s32.f32 %v169
    %v186 = vpack.c.bf16 %v171, %v170
    %v187 = vpack.c.bf16 %v173, %v172
    %v188 = vpack.c.bf16 %v175, %v174
    %v189 = vpack.c.bf16 %v177, %v176
    %v190 = vpack.c.bf16 %v179, %v178
    %v191 = vpack.c.bf16 %v181, %v180
    %v192 = vpack.c.bf16 %v183, %v182
    %v193 = vpack.c.bf16 %v185, %v184
    %v194 = vld [vmem:[%s1] sm:$0xf]
    %v195 = vld [vmem:[%s1 + $0x4] sm:$0xf]
    %v196 = vld [vmem:[%s1 + $0x8] sm:$0xf]
    %v197 = vld [vmem:[%s1 + $0xc] sm:$0xf]
    %v198 = vld [vmem:[%s1 + $0x10] sm:$0xf]
    %v199 = vld [vmem:[%s1 + $0x14] sm:$0xf]
    %v200 = vld [vmem:[%s1 + $0x18] sm:$0xf]
    %v201 = vld [vmem:[%s1 + $0x1c] sm:$0xf]
    %v202 = vld [vmem:[%s1 + $0x20] sm:$0xf]
    %v203 = vld [vmem:[%s1 + $0x24] sm:$0xf]
    %v204 = vld [vmem:[%s1 + $0x28] sm:$0xf]
    %v205 = vld [vmem:[%s1 + $0x2c] sm:$0xf]
    %v206 = vld [vmem:[%s1 + $0x30] sm:$0xf]
    %v207 = vld [vmem:[%s1 + $0x34] sm:$0xf]
    %v208 = vld [vmem:[%s1 + $0x38] sm:$0xf]
    %v209 = vld [vmem:[%s1 + $0x3c] sm:$0xf]
    %v226 = vunpack.c.l.b16 %v194
    %v227 = vunpack.c.l.b16 %v195
    %v228 = vunpack.c.l.b16 %v196
    %v229 = vunpack.c.l.b16 %v197
    %v230 = vunpack.c.l.b16 %v198
    %v231 = vunpack.c.l.b16 %v199
    %v232 = vunpack.c.l.b16 %v200
    %v233 = vunpack.c.l.b16 %v201
    %v234 = vunpack.c.l.b16 %v202
    %v235 = vunpack.c.l.b16 %v203
    %v236 = vunpack.c.l.b16 %v204
    %v237 = vunpack.c.l.b16 %v205
    %v238 = vunpack.c.l.b16 %v206
    %v239 = vunpack.c.l.b16 %v207
    %v240 = vunpack.c.l.b16 %v208
    %v241 = vunpack.c.l.b16 %v209
    %v242 = vpack.c.b16 %v227, %v226
    %v243 = vpack.c.b16 %v229, %v228
    %v244 = vpack.c.b16 %v231, %v230
    %v245 = vpack.c.b16 %v233, %v232
    %v246 = vpack.c.b16 %v235, %v234
    %v247 = vpack.c.b16 %v237, %v236
    %v248 = vpack.c.b16 %v239, %v238
    %v249 = vpack.c.b16 %v241, %v240
    %258 = vmatprep.subr.bf16.mxu0 0
    %259 = vmatpush1.bf16.msra.mxu0 %v242
    %260 = vmatprep.subr.bf16.mxu0 0
    %261 = vmatpush1.bf16.msra.mxu0 %v243
    %262 = vmatprep.subr.bf16.mxu0 0
    %263 = vmatpush1.bf16.msra.mxu0 %v244
    %264 = vmatprep.subr.bf16.mxu0 0
    %265 = vmatpush1.bf16.msra.mxu0 %v245
    %266 = vmatprep.subr.bf16.mxu0 0
    %267 = vmatpush1.bf16.msra.mxu0 %v246
    %268 = vmatprep.subr.bf16.mxu0 0
    %269 = vmatpush1.bf16.msra.mxu0 %v247
    %270 = vmatprep.subr.bf16.mxu0 0
    %271 = vmatpush1.bf16.msra.mxu0 %v248
    %272 = vmatprep.subr.bf16.mxu0 0
    %273 = vmatpush1.bf16.msra.mxu0 %v249
    %274 = vmatprep.subr.bf16.mxu0 0
    %275 = vmatpush1.bf16.msra.mxu0 0
    %276 = vmatprep.subr.bf16.mxu0 0
    %277 = vmatpush1.bf16.msra.mxu0 0
    %278 = vmatprep.subr.bf16.mxu0 0
    %279 = vmatpush1.bf16.msra.mxu0 0
    %280 = vmatprep.subr.bf16.mxu0 0
    %281 = vmatpush1.bf16.msra.mxu0 0
    %282 = vmatprep.subr.bf16.mxu0 0
    %283 = vmatpush1.bf16.msra.mxu0 0
    %284 = vmatprep.subr.bf16.mxu0 0
    %285 = vmatpush1.bf16.msra.mxu0 0
    %286 = vmatprep.subr.bf16.mxu0 0
    %287 = vmatpush1.bf16.msra.mxu0 0
    %288 = vmatprep.subr.bf16.mxu0 0
    %289 = vmatpush1.bf16.msra.mxu0 0
    %290 = vmatprep.mubr.bf16.mxu0 0
    %291 = vmatmul.mubr.bf16.gmra.mrb[0].mxu0 %v186
    %v292 = vpop.f32.mrb[0].mxu0
    %v293 = vadd.f32 0.0, %v292
    %v294 = vpop.f32.mrb[0].mxu0
    %v295 = vpop.f32.mrb[0].mxu0
    %v296 = vadd.f32 0.0, %v295
    %v297 = vpop.f32.mrb[0].mxu0
    %298 = vmatprep.mubr.bf16.mxu0 0
    %299 = vmatmul.mubr.bf16.gmra.mrb[0].mxu0 %v187
    %v300 = vpop.f32.mrb[0].mxu0
    %v301 = vadd.f32 0.0, %v300
    %v302 = vpop.f32.mrb[0].mxu0
    %v303 = vpop.f32.mrb[0].mxu0
    %v304 = vadd.f32 0.0, %v303
    %v305 = vpop.f32.mrb[0].mxu0
    %306 = vmatprep.mubr.bf16.mxu0 0
    %307 = vmatmul.mubr.bf16.gmra.mrb[0].mxu0 %v188
    %v308 = vpop.f32.mrb[0].mxu0
    %v309 = vadd.f32 0.0, %v308
    %v310 = vpop.f32.mrb[0].mxu0
    %v311 = vpop.f32.mrb[0].mxu0
    %v312 = vadd.f32 0.0, %v311
    %v313 = vpop.f32.mrb[0].mxu0
    %314 = vmatprep.mubr.bf16.mxu0 0
    %315 = vmatmul.mubr.bf16.gmra.mrb[0].mxu0 %v189
    %v316 = vpop.f32.mrb[0].mxu0
    %v317 = vadd.f32 0.0, %v316
    %v318 = vpop.f32.mrb[0].mxu0
    %v319 = vpop.f32.mrb[0].mxu0
    %v320 = vadd.f32 0.0, %v319
    %v321 = vpop.f32.mrb[0].mxu0
    %322 = vmatprep.mubr.bf16.mxu0 0
    %323 = vmatmul.mubr.bf16.gmra.mrb[0].mxu0 %v190
    %v324 = vpop.f32.mrb[0].mxu0
    %v325 = vadd.f32 0.0, %v324
    %v326 = vpop.f32.mrb[0].mxu0
    %v327 = vpop.f32.mrb[0].mxu0
    %v328 = vadd.f32 0.0, %v327
    %v329 = vpop.f32.mrb[0].mxu0
    %330 = vmatprep.mubr.bf16.mxu0 0
    %331 = vmatmul.mubr.bf16.gmra.mrb[0].mxu0 %v191
    %v332 = vpop.f32.mrb[0].mxu0
    %v333 = vadd.f32 0.0, %v332
    %v334 = vpop.f32.mrb[0].mxu0
    %v335 = vpop.f32.mrb[0].mxu0
    %v336 = vadd.f32 0.0, %v335
    %v337 = vpop.f32.mrb[0].mxu0
    %338 = vmatprep.mubr.bf16.mxu0 0
    %339 = vmatmul.mubr.bf16.gmra.mrb[0].mxu0 %v192
    %v340 = vpop.f32.mrb[0].mxu0
    %v341 = vadd.f32 0.0, %v340
    %v342 = vpop.f32.mrb[0].mxu0
    %v343 = vpop.f32.mrb[0].mxu0
    %v344 = vadd.f32 0.0, %v343
    %v345 = vpop.f32.mrb[0].mxu0
    %346 = vmatprep.mubr.bf16.mxu0 0
    %347 = vmatmul.mubr.bf16.gmra.mrb[0].mxu0 %v193
    %v348 = vpop.f32.mrb[0].mxu0
    %v349 = vadd.f32 0.0, %v348
    %v350 = vpop.f32.mrb[0].mxu0
    %v351 = vpop.f32.mrb[0].mxu0
    %v352 = vadd.f32 0.0, %v351
    %v353 = vpop.f32.mrb[0].mxu0
    %354 = vdwg.mxu0
    %v355 = vpack.c.bf16 %v296, %v293
    %v356 = vpack.c.bf16 %v304, %v301
    %v357 = vpack.c.bf16 %v312, %v309
    %v358 = vpack.c.bf16 %v320, %v317
    %v359 = vpack.c.bf16 %v328, %v325
    %v360 = vpack.c.bf16 %v336, %v333
    %v361 = vpack.c.bf16 %v344, %v341
    %v362 = vpack.c.bf16 %v352, %v349
    %v363 = vld [vmem:[%s2] sm:$0xff]
    %v364 = vld [vmem:[%s2 + $0x8] sm:$0xff]
    %v365 = vld [vmem:[%s2 + $0x10] sm:$0xff]
    %v366 = vld [vmem:[%s2 + $0x18] sm:$0xff]
    %v367 = vld [vmem:[%s2 + $0x20] sm:$0xff]
    %v368 = vld [vmem:[%s2 + $0x28] sm:$0xff]
    %v369 = vld [vmem:[%s2 + $0x30] sm:$0xff]
    %v370 = vld [vmem:[%s2 + $0x38] sm:$0xff]
    %v371 = vld [vmem:[%s2 + $0x40] sm:$0xff]
    %v372 = vld [vmem:[%s2 + $0x48] sm:$0xff]
    %v373 = vld [vmem:[%s2 + $0x50] sm:$0xff]
    %v374 = vld [vmem:[%s2 + $0x58] sm:$0xff]
    %v375 = vld [vmem:[%s2 + $0x60] sm:$0xff]
    %v376 = vld [vmem:[%s2 + $0x68] sm:$0xff]
    %v377 = vld [vmem:[%s2 + $0x70] sm:$0xff]
    %v378 = vld [vmem:[%s2 + $0x78] sm:$0xff]
    %v379 = vld [vmem:[%s4] sm:$0xf]
    %v381 = vlaneseq
    %v382 = vshrl.u32 %v381, 7
    %v383 = vsub.s32 0, %v382
    %v384 = vrot.slane %v379, %v383
    %v385 = vlaneseq
    %v386 = vshrl.u32 %v385, 7
    %v387 = vsub.s32 1, %v386
    %v388 = vrot.slane %v379, %v387
    %v389 = vlaneseq
    %v390 = vshrl.u32 %v389, 7
    %v391 = vsub.s32 2, %v390
    %v392 = vrot.slane %v379, %v391
    %v393 = vlaneseq
    %v394 = vshrl.u32 %v393, 7
    %v395 = vsub.s32 3, %v394
    %v396 = vrot.slane %v379, %v395
    %v417 = vunpack.c.l.b16 %v363
    %v418 = vunpack.c.h.b16 %v363
    %v419 = vunpack.c.l.b16 %v364
    %v420 = vunpack.c.h.b16 %v364
    %v421 = vunpack.c.l.b16 %v365
    %v422 = vunpack.c.h.b16 %v365
    %v423 = vunpack.c.l.b16 %v366
    %v424 = vunpack.c.h.b16 %v366
    %v425 = vunpack.c.l.b16 %v367
    %v426 = vunpack.c.h.b16 %v367
    %v427 = vunpack.c.l.b16 %v368
    %v428 = vunpack.c.h.b16 %v368
    %v429 = vunpack.c.l.b16 %v369
    %v430 = vunpack.c.h.b16 %v369
    %v431 = vunpack.c.l.b16 %v370
    %v432 = vunpack.c.h.b16 %v370
    %v433 = vunpack.c.l.b16 %v371
    %v434 = vunpack.c.h.b16 %v371
    %v435 = vunpack.c.l.b16 %v372
    %v436 = vunpack.c.h.b16 %v372
    %v437 = vunpack.c.l.b16 %v373
    %v438 = vunpack.c.h.b16 %v373
    %v439 = vunpack.c.l.b16 %v374
    %v440 = vunpack.c.h.b16 %v374
    %v441 = vunpack.c.l.b16 %v375
    %v442 = vunpack.c.h.b16 %v375
    %v443 = vunpack.c.l.b16 %v376
    %v444 = vunpack.c.h.b16 %v376
    %v445 = vunpack.c.l.b16 %v377
    %v446 = vunpack.c.h.b16 %v377
    %v447 = vunpack.c.l.b16 %v378
    %v448 = vunpack.c.h.b16 %v378
    %v449 = vpack.c.b16 %v421, %v417
    %v450 = vpack.c.b16 %v422, %v418
    %v451 = vpack.c.b16 %v423, %v419
    %v452 = vpack.c.b16 %v424, %v420
    %v453 = vpack.c.b16 %v429, %v425
    %v454 = vpack.c.b16 %v430, %v426
    %v455 = vpack.c.b16 %v431, %v427
    %v456 = vpack.c.b16 %v432, %v428
    %v457 = vpack.c.b16 %v437, %v433
    %v458 = vpack.c.b16 %v438, %v434
    %v459 = vpack.c.b16 %v439, %v435
    %v460 = vpack.c.b16 %v440, %v436
    %v461 = vpack.c.b16 %v445, %v441
    %v462 = vpack.c.b16 %v446, %v442
    %v463 = vpack.c.b16 %v447, %v443
    %v464 = vpack.c.b16 %v448, %v444
    %vm481 = vcmask 523264
    %v483 = vsel %vm481, %v355, 0
    %v486 = vsel %vm481, %v356, 0
    %v489 = vsel %vm481, %v357, 0
    %v492 = vsel %vm481, %v358, 0
    %v495 = vsel %vm481, %v359, 0
    %v498 = vsel %vm481, %v360, 0
    %v501 = vsel %vm481, %v361, 0
    %v504 = vsel %vm481, %v362, 0
    %506 = vmatprep.subr.bf16.mxu0 %v450
    %507 = vmatpush1.bf16.msra.mxu0 %v449
    %508 = vmatprep.subr.bf16.mxu0 %v454
    %509 = vmatpush1.bf16.msra.mxu0 %v453
    %510 = vmatprep.subr.bf16.mxu0 %v458
    %511 = vmatpush1.bf16.msra.mxu0 %v457
    %512 = vmatprep.subr.bf16.mxu0 %v462
    %513 = vmatpush1.bf16.msra.mxu0 %v461
    %514 = vmatprep.subr.bf16.mxu0 0
    %515 = vmatpush1.bf16.msra.mxu0 0
    %516 = vmatprep.subr.bf16.mxu0 0
    %517 = vmatpush1.bf16.msra.mxu0 0
    %518 = vmatprep.subr.bf16.mxu0 0
    %519 = vmatpush1.bf16.msra.mxu0 0
    %520 = vmatprep.subr.bf16.mxu0 0
    %521 = vmatpush1.bf16.msra.mxu0 0
    %522 = vmatprep.subr.bf16.mxu0 0
    %523 = vmatpush1.bf16.msra.mxu0 0
    %524 = vmatprep.subr.bf16.mxu0 0
    %525 = vmatpush1.bf16.msra.mxu0 0
    %526 = vmatprep.subr.bf16.mxu0 0
    %527 = vmatpush1.bf16.msra.mxu0 0
    %528 = vmatprep.subr.bf16.mxu0 0
    %529 = vmatpush1.bf16.msra.mxu0 0
    %530 = vmatprep.subr.bf16.mxu0 0
    %531 = vmatpush1.bf16.msra.mxu0 0
    %532 = vmatprep.subr.bf16.mxu0 0
    %533 = vmatpush1.bf16.msra.mxu0 0
    %534 = vmatprep.subr.bf16.mxu0 0
    %535 = vmatpush1.bf16.msra.mxu0 0
    %536 = vmatprep.subr.bf16.mxu0 0
    %537 = vmatpush1.bf16.msra.mxu0 0
    %538 = vmatprep.mubr.bf16.mxu0 0
    %539 = vmatmul.mubr.bf16.gmra.mrb[0].mxu0 %v483
    %v540 = vpop.f32.mrb[0].mxu0
    %v541 = vadd.f32 %v384, %v540
    %v542 = vpop.f32.mrb[0].mxu0
    %v543 = vadd.f32 %v388, %v542
    %v544 = vpop.f32.mrb[0].mxu0
    %v545 = vadd.f32 %v384, %v544
    %v546 = vpop.f32.mrb[0].mxu0
    %v547 = vadd.f32 %v388, %v546
    %548 = vmatprep.mubr.bf16.mxu0 0
    %549 = vmatmul.mubr.bf16.gmra.mrb[0].mxu0 %v486
    %v550 = vpop.f32.mrb[0].mxu0
    %v551 = vadd.f32 %v384, %v550
    %v552 = vpop.f32.mrb[0].mxu0
    %v553 = vadd.f32 %v388, %v552
    %v554 = vpop.f32.mrb[0].mxu0
    %v555 = vadd.f32 %v384, %v554
    %v556 = vpop.f32.mrb[0].mxu0
    %v557 = vadd.f32 %v388, %v556
    %558 = vmatprep.mubr.bf16.mxu0 0
    %559 = vmatmul.mubr.bf16.gmra.mrb[0].mxu0 %v489
    %v560 = vpop.f32.mrb[0].mxu0
    %v561 = vadd.f32 %v384, %v560
    %v562 = vpop.f32.mrb[0].mxu0
    %v563 = vadd.f32 %v388, %v562
    %v564 = vpop.f32.mrb[0].mxu0
    %v565 = vadd.f32 %v384, %v564
    %v566 = vpop.f32.mrb[0].mxu0
    %v567 = vadd.f32 %v388, %v566
    %568 = vmatprep.mubr.bf16.mxu0 0
    %569 = vmatmul.mubr.bf16.gmra.mrb[0].mxu0 %v492
    %v570 = vpop.f32.mrb[0].mxu0
    %v571 = vadd.f32 %v384, %v570
    %v572 = vpop.f32.mrb[0].mxu0
    %v573 = vadd.f32 %v388, %v572
    %v574 = vpop.f32.mrb[0].mxu0
    %v575 = vadd.f32 %v384, %v574
    %v576 = vpop.f32.mrb[0].mxu0
    %v577 = vadd.f32 %v388, %v576
    %578 = vmatprep.mubr.bf16.mxu0 0
    %579 = vmatmul.mubr.bf16.gmra.mrb[0].mxu0 %v495
    %v580 = vpop.f32.mrb[0].mxu0
    %v581 = vadd.f32 %v384, %v580
    %v582 = vpop.f32.mrb[0].mxu0
    %v583 = vadd.f32 %v388, %v582
    %v584 = vpop.f32.mrb[0].mxu0
    %v585 = vadd.f32 %v384, %v584
    %v586 = vpop.f32.mrb[0].mxu0
    %v587 = vadd.f32 %v388, %v586
    %588 = vmatprep.mubr.bf16.mxu0 0
    %589 = vmatmul.mubr.bf16.gmra.mrb[0].mxu0 %v498
    %v590 = vpop.f32.mrb[0].mxu0
    %v591 = vadd.f32 %v384, %v590
    %v592 = vpop.f32.mrb[0].mxu0
    %v593 = vadd.f32 %v388, %v592
    %v594 = vpop.f32.mrb[0].mxu0
    %v595 = vadd.f32 %v384, %v594
    %v596 = vpop.f32.mrb[0].mxu0
    %v597 = vadd.f32 %v388, %v596
    %598 = vmatprep.mubr.bf16.mxu0 0
    %599 = vmatmul.mubr.bf16.gmra.mrb[0].mxu0 %v501
    %v600 = vpop.f32.mrb[0].mxu0
    %v601 = vadd.f32 %v384, %v600
    %v602 = vpop.f32.mrb[0].mxu0
    %v603 = vadd.f32 %v388, %v602
    %v604 = vpop.f32.mrb[0].mxu0
    %v605 = vadd.f32 %v384, %v604
    %v606 = vpop.f32.mrb[0].mxu0
    %v607 = vadd.f32 %v388, %v606
    %608 = vmatprep.mubr.bf16.mxu0 0
    %609 = vmatmul.mubr.bf16.gmra.mrb[0].mxu0 %v504
    %v610 = vpop.f32.mrb[0].mxu0
    %v611 = vadd.f32 %v384, %v610
    %v612 = vpop.f32.mrb[0].mxu0
    %v613 = vadd.f32 %v388, %v612
    %v614 = vpop.f32.mrb[0].mxu0
    %v615 = vadd.f32 %v384, %v614
    %v616 = vpop.f32.mrb[0].mxu0
    %v617 = vadd.f32 %v388, %v616
    %618 = vdwg.mxu0
    %619 = vmatprep.subr.bf16.mxu0 %v452
    %620 = vmatpush1.bf16.msra.mxu0 %v451
    %621 = vmatprep.subr.bf16.mxu0 %v456
    %622 = vmatpush1.bf16.msra.mxu0 %v455
    %623 = vmatprep.subr.bf16.mxu0 %v460
    %624 = vmatpush1.bf16.msra.mxu0 %v459
    %625 = vmatprep.subr.bf16.mxu0 %v464
    %626 = vmatpush1.bf16.msra.mxu0 %v463
    %627 = vmatprep.subr.bf16.mxu0 0
    %628 = vmatpush1.bf16.msra.mxu0 0
    %629 = vmatprep.subr.bf16.mxu0 0
    %630 = vmatpush1.bf16.msra.mxu0 0
    %631 = vmatprep.subr.bf16.mxu0 0
    %632 = vmatpush1.bf16.msra.mxu0 0
    %633 = vmatprep.subr.bf16.mxu0 0
    %634 = vmatpush1.bf16.msra.mxu0 0
    %635 = vmatprep.subr.bf16.mxu0 0
    %636 = vmatpush1.bf16.msra.mxu0 0
    %637 = vmatprep.subr.bf16.mxu0 0
    %638 = vmatpush1.bf16.msra.mxu0 0
    %639 = vmatprep.subr.bf16.mxu0 0
    %640 = vmatpush1.bf16.msra.mxu0 0
    %641 = vmatprep.subr.bf16.mxu0 0
    %642 = vmatpush1.bf16.msra.mxu0 0
    %643 = vmatprep.subr.bf16.mxu0 0
    %644 = vmatpush1.bf16.msra.mxu0 0
    %645 = vmatprep.subr.bf16.mxu0 0
    %646 = vmatpush1.bf16.msra.mxu0 0
    %647 = vmatprep.subr.bf16.mxu0 0
    %648 = vmatpush1.bf16.msra.mxu0 0
    %649 = vmatprep.subr.bf16.mxu0 0
    %650 = vmatpush1.bf16.msra.mxu0 0
    %651 = vmatprep.mubr.bf16.mxu0 0
    %652 = vmatmul.mubr.bf16.gmra.mrb[0].mxu0 %v483
    %v653 = vpop.f32.mrb[0].mxu0
    %v654 = vadd.f32 %v392, %v653
    %v655 = vpop.f32.mrb[0].mxu0
    %v656 = vadd.f32 %v396, %v655
    %v657 = vpop.f32.mrb[0].mxu0
    %v658 = vadd.f32 %v392, %v657
    %v659 = vpop.f32.mrb[0].mxu0
    %v660 = vadd.f32 %v396, %v659
    %661 = vmatprep.mubr.bf16.mxu0 0
    %662 = vmatmul.mubr.bf16.gmra.mrb[0].mxu0 %v486
    %v663 = vpop.f32.mrb[0].mxu0
    %v664 = vadd.f32 %v392, %v663
    %v665 = vpop.f32.mrb[0].mxu0
    %v666 = vadd.f32 %v396, %v665
    %v667 = vpop.f32.mrb[0].mxu0
    %v668 = vadd.f32 %v392, %v667
    %v669 = vpop.f32.mrb[0].mxu0
    %v670 = vadd.f32 %v396, %v669
    %671 = vmatprep.mubr.bf16.mxu0 0
    %672 = vmatmul.mubr.bf16.gmra.mrb[0].mxu0 %v489
    %v673 = vpop.f32.mrb[0].mxu0
    %v674 = vadd.f32 %v392, %v673
    %v675 = vpop.f32.mrb[0].mxu0
    %v676 = vadd.f32 %v396, %v675
    %v677 = vpop.f32.mrb[0].mxu0
    %v678 = vadd.f32 %v392, %v677
    %v679 = vpop.f32.mrb[0].mxu0
    %v680 = vadd.f32 %v396, %v679
    %681 = vmatprep.mubr.bf16.mxu0 0
    %682 = vmatmul.mubr.bf16.gmra.mrb[0].mxu0 %v492
    %v683 = vpop.f32.mrb[0].mxu0
    %v684 = vadd.f32 %v392, %v683
    %v685 = vpop.f32.mrb[0].mxu0
    %v686 = vadd.f32 %v396, %v685
    %v687 = vpop.f32.mrb[0].mxu0
    %v688 = vadd.f32 %v392, %v687
    %v689 = vpop.f32.mrb[0].mxu0
    %v690 = vadd.f32 %v396, %v689
    %691 = vmatprep.mubr.bf16.mxu0 0
    %692 = vmatmul.mubr.bf16.gmra.mrb[0].mxu0 %v495
    %v693 = vpop.f32.mrb[0].mxu0
    %v694 = vadd.f32 %v392, %v693
    %v695 = vpop.f32.mrb[0].mxu0
    %v696 = vadd.f32 %v396, %v695
    %v697 = vpop.f32.mrb[0].mxu0
    %v698 = vadd.f32 %v392, %v697
    %v699 = vpop.f32.mrb[0].mxu0
    %v700 = vadd.f32 %v396, %v699
    %701 = vmatprep.mubr.bf16.mxu0 0
    %702 = vmatmul.mubr.bf16.gmra.mrb[0].mxu0 %v498
    %v703 = vpop.f32.mrb[0].mxu0
    %v704 = vadd.f32 %v392, %v703
    %v705 = vpop.f32.mrb[0].mxu0
    %v706 = vadd.f32 %v396, %v705
    %v707 = vpop.f32.mrb[0].mxu0
    %v708 = vadd.f32 %v392, %v707
    %v709 = vpop.f32.mrb[0].mxu0
    %v710 = vadd.f32 %v396, %v709
    %711 = vmatprep.mubr.bf16.mxu0 0
    %712 = vmatmul.mubr.bf16.gmra.mrb[0].mxu0 %v501
    %v713 = vpop.f32.mrb[0].mxu0
    %v714 = vadd.f32 %v392, %v713
    %v715 = vpop.f32.mrb[0].mxu0
    %v716 = vadd.f32 %v396, %v715
    %v717 = vpop.f32.mrb[0].mxu0
    %v718 = vadd.f32 %v392, %v717
    %v719 = vpop.f32.mrb[0].mxu0
    %v720 = vadd.f32 %v396, %v719
    %721 = vmatprep.mubr.bf16.mxu0 0
    %722 = vmatmul.mubr.bf16.gmra.mrb[0].mxu0 %v504
    %v723 = vpop.f32.mrb[0].mxu0
    %v724 = vadd.f32 %v392, %v723
    %v725 = vpop.f32.mrb[0].mxu0
    %v726 = vadd.f32 %v396, %v725
    %v727 = vpop.f32.mrb[0].mxu0
    %v728 = vadd.f32 %v392, %v727
    %v729 = vpop.f32.mrb[0].mxu0
    %v730 = vadd.f32 %v396, %v729
    %731 = vdwg.mxu0
    %v732 = vpack.c.bf16 %v545, %v541
    %v733 = vpack.c.bf16 %v547, %v543
    %v734 = vpack.c.bf16 %v658, %v654
    %v735 = vpack.c.bf16 %v660, %v656
    %v736 = vpack.c.bf16 %v555, %v551
    %v737 = vpack.c.bf16 %v557, %v553
    %v738 = vpack.c.bf16 %v668, %v664
    %v739 = vpack.c.bf16 %v670, %v666
    %v740 = vpack.c.bf16 %v565, %v561
    %v741 = vpack.c.bf16 %v567, %v563
    %v742 = vpack.c.bf16 %v678, %v674
    %v743 = vpack.c.bf16 %v680, %v676
    %v744 = vpack.c.bf16 %v575, %v571
    %v745 = vpack.c.bf16 %v577, %v573
    %v746 = vpack.c.bf16 %v688, %v684
    %v747 = vpack.c.bf16 %v690, %v686
    %v748 = vpack.c.bf16 %v585, %v581
    %v749 = vpack.c.bf16 %v587, %v583
    %v750 = vpack.c.bf16 %v698, %v694
    %v751 = vpack.c.bf16 %v700, %v696
    %v752 = vpack.c.bf16 %v595, %v591
    %v753 = vpack.c.bf16 %v597, %v593
    %v754 = vpack.c.bf16 %v708, %v704
    %v755 = vpack.c.bf16 %v710, %v706
    %v756 = vpack.c.bf16 %v605, %v601
    %v757 = vpack.c.bf16 %v607, %v603
    %v758 = vpack.c.bf16 %v718, %v714
    %v759 = vpack.c.bf16 %v720, %v716
    %v760 = vpack.c.bf16 %v615, %v611
    %v761 = vpack.c.bf16 %v617, %v613
    %v762 = vpack.c.bf16 %v728, %v724
    %v763 = vpack.c.bf16 %v730, %v726
    %764 = vst [vmem:[#allocation4] sm:$0xff] %v732
    %765 = vst [vmem:[#allocation4 + $0x8] sm:$0xff] %v733
    %766 = vst [vmem:[#allocation4 + $0x10] sm:$0xff] %v734
    %767 = vst [vmem:[#allocation4 + $0x18] sm:$0xff] %v735
    %768 = vst [vmem:[#allocation4 + $0x20] sm:$0xff] %v736
    %769 = vst [vmem:[#allocation4 + $0x28] sm:$0xff] %v737
    %770 = vst [vmem:[#allocation4 + $0x30] sm:$0xff] %v738
    %771 = vst [vmem:[#allocation4 + $0x38] sm:$0xff] %v739
    %772 = vst [vmem:[#allocation4 + $0x40] sm:$0xff] %v740
    %773 = vst [vmem:[#allocation4 + $0x48] sm:$0xff] %v741
    %774 = vst [vmem:[#allocation4 + $0x50] sm:$0xff] %v742
    %775 = vst [vmem:[#allocation4 + $0x58] sm:$0xff] %v743
    %776 = vst [vmem:[#allocation4 + $0x60] sm:$0xff] %v744
    %777 = vst [vmem:[#allocation4 + $0x68] sm:$0xff] %v745
    %778 = vst [vmem:[#allocation4 + $0x70] sm:$0xff] %v746
    %779 = vst [vmem:[#allocation4 + $0x78] sm:$0xff] %v747
    %780 = vst [vmem:[#allocation4 + $0x80] sm:$0xff] %v748
    %781 = vst [vmem:[#allocation4 + $0x88] sm:$0xff] %v749
    %782 = vst [vmem:[#allocation4 + $0x90] sm:$0xff] %v750
    %783 = vst [vmem:[#allocation4 + $0x98] sm:$0xff] %v751
    %784 = vst [vmem:[#allocation4 + $0xa0] sm:$0xff] %v752
    %785 = vst [vmem:[#allocation4 + $0xa8] sm:$0xff] %v753
    %786 = vst [vmem:[#allocation4 + $0xb0] sm:$0xff] %v754
    %787 = vst [vmem:[#allocation4 + $0xb8] sm:$0xff] %v755
    %788 = vst [vmem:[#allocation4 + $0xc0] sm:$0xff] %v756
    %789 = vst [vmem:[#allocation4 + $0xc8] sm:$0xff] %v757
    %790 = vst [vmem:[#allocation4 + $0xd0] sm:$0xff] %v758
    %791 = vst [vmem:[#allocation4 + $0xd8] sm:$0xff] %v759
    %792 = vst [vmem:[#allocation4 + $0xe0] sm:$0xff] %v760
    %793 = vst [vmem:[#allocation4 + $0xe8] sm:$0xff] %v761
    %794 = vst [vmem:[#allocation4 + $0xf0] sm:$0xff] %v762
    %795 = vst [vmem:[#allocation4 + $0xf8] sm:$0xff] %v763
    %v796 = vld [vmem:[#allocation5] sm:$0xff]
    %v797 = vld [vmem:[#allocation5 + $0x8] sm:$0xff]
    %v798 = vld [vmem:[#allocation5 + $0x10] sm:$0xff]
    %v799 = vld [vmem:[#allocation5 + $0x18] sm:$0xff]
    %v800 = vld [vmem:[#allocation5 + $0x20] sm:$0xff]
    %v801 = vld [vmem:[#allocation5 + $0x28] sm:$0xff]
    %v802 = vld [vmem:[#allocation5 + $0x30] sm:$0xff]
    %v803 = vld [vmem:[#allocation5 + $0x38] sm:$0xff]
    %v804 = vld [vmem:[#allocation5 + $0x40] sm:$0xff]
    %v805 = vld [vmem:[#allocation5 + $0x48] sm:$0xff]
    %v806 = vld [vmem:[#allocation5 + $0x50] sm:$0xff]
    %v807 = vld [vmem:[#allocation5 + $0x58] sm:$0xff]
    %v808 = vld [vmem:[#allocation5 + $0x60] sm:$0xff]
    %v809 = vld [vmem:[#allocation5 + $0x68] sm:$0xff]
    %v810 = vld [vmem:[#allocation5 + $0x70] sm:$0xff]
    %v811 = vld [vmem:[#allocation5 + $0x78] sm:$0xff]
    %v812 = vld [vmem:[#allocation5 + $0x80] sm:$0xff]
    %v813 = vld [vmem:[#allocation5 + $0x88] sm:$0xff]
    %v814 = vld [vmem:[#allocation5 + $0x90] sm:$0xff]
    %v815 = vld [vmem:[#allocation5 + $0x98] sm:$0xff]
    %v816 = vld [vmem:[#allocation5 + $0xa0] sm:$0xff]
    %v817 = vld [vmem:[#allocation5 + $0xa8] sm:$0xff]
    %v818 = vld [vmem:[#allocation5 + $0xb0] sm:$0xff]
    %v819 = vld [vmem:[#allocation5 + $0xb8] sm:$0xff]
    %v820 = vld [vmem:[#allocation5 + $0xc0] sm:$0xff]
    %v821 = vld [vmem:[#allocation5 + $0xc8] sm:$0xff]
    %v822 = vld [vmem:[#allocation5 + $0xd0] sm:$0xff]
    %v823 = vld [vmem:[#allocation5 + $0xd8] sm:$0xff]
    %v824 = vld [vmem:[#allocation5 + $0xe0] sm:$0xff]
    %v825 = vld [vmem:[#allocation5 + $0xe8] sm:$0xff]
    %v826 = vld [vmem:[#allocation5 + $0xf0] sm:$0xff]
    %v827 = vld [vmem:[#allocation5 + $0xf8] sm:$0xff]
    %v828 = vld [vmem:[#allocation2] sm:$0xff]
    %v829 = vld [vmem:[#allocation2 + $0x8] sm:$0xff]
    %v830 = vld [vmem:[#allocation3] sm:$0xff]
    %v831 = vld [vmem:[#allocation3 + $0x8] sm:$0xff]
    %s832 = smul.u32 0, 4
    %s833 = smul.addr %s832, 8
    %s834 = scalar_lea.vmem [#allocation4], %s833
    %v835 = vld [vmem:[%s834] sm:$0xff]
    %v836 = vld [vmem:[%s834 + $0x8] sm:$0xff]
    %v837 = vld [vmem:[%s834 + $0x10] sm:$0xff]
    %v838 = vld [vmem:[%s834 + $0x18] sm:$0xff]
    %v839 = vunpack.c.l.bf16 %v835
    %v840 = vunpack.c.l.bf16 %v836
    %v841 = vunpack.c.l.bf16 %v837
    %v842 = vunpack.c.l.bf16 %v838
    %v843 = vunpack.c.h.bf16 %v835
    %v844 = vunpack.c.h.bf16 %v836
    %v845 = vunpack.c.h.bf16 %v837
    %v846 = vunpack.c.h.bf16 %v838
    %v847 = vpack.c.bf16 %v829, %v828
    %v880 = vunpack.c.l.b16 %v796
    %v881 = vunpack.c.h.b16 %v796
    %v882 = vunpack.c.l.b16 %v797
    %v883 = vunpack.c.h.b16 %v797
    %v884 = vunpack.c.l.b16 %v798
    %v885 = vunpack.c.h.b16 %v798
    %v886 = vunpack.c.l.b16 %v799
    %v887 = vunpack.c.h.b16 %v799
    %v888 = vunpack.c.l.b16 %v800
    %v889 = vunpack.c.h.b16 %v800
    %v890 = vunpack.c.l.b16 %v801
    %v891 = vunpack.c.h.b16 %v801
    %v892 = vunpack.c.l.b16 %v802
    %v893 = vunpack.c.h.b16 %v802
    %v894 = vunpack.c.l.b16 %v803
    %v895 = vunpack.c.h.b16 %v803
    %v896 = vunpack.c.l.b16 %v804
    %v897 = vunpack.c.h.b16 %v804
    %v898 = vunpack.c.l.b16 %v805
    %v899 = vunpack.c.h.b16 %v805
    %v900 = vunpack.c.l.b16 %v806
    %v901 = vunpack.c.h.b16 %v806
    %v902 = vunpack.c.l.b16 %v807
    %v903 = vunpack.c.h.b16 %v807
    %v904 = vunpack.c.l.b16 %v808
    %v905 = vunpack.c.h.b16 %v808
    %v906 = vunpack.c.l.b16 %v809
    %v907 = vunpack.c.h.b16 %v809
    %v908 = vunpack.c.l.b16 %v810
    %v909 = vunpack.c.h.b16 %v810
    %v910 = vunpack.c.l.b16 %v811
    %v911 = vunpack.c.h.b16 %v811
    %v912 = vunpack.c.l.b16 %v812
    %v913 = vunpack.c.h.b16 %v812
    %v914 = vunpack.c.l.b16 %v813
    %v915 = vunpack.c.h.b16 %v813
    %v916 = vunpack.c.l.b16 %v814
    %v917 = vunpack.c.h.b16 %v814
    %v918 = vunpack.c.l.b16 %v815
    %v919 = vunpack.c.h.b16 %v815
    %v920 = vunpack.c.l.b16 %v816
    %v921 = vunpack.c.h.b16 %v816
    %v922 = vunpack.c.l.b16 %v817
    %v923 = vunpack.c.h.b16 %v817
    %v924 = vunpack.c.l.b16 %v818
    %v925 = vunpack.c.h.b16 %v818
    %v926 = vunpack.c.l.b16 %v819
    %v927 = vunpack.c.h.b16 %v819
    %v928 = vunpack.c.l.b16 %v820
    %v929 = vunpack.c.h.b16 %v820
    %v930 = vunpack.c.l.b16 %v821
    %v931 = vunpack.c.h.b16 %v821
    %v932 = vunpack.c.l.b16 %v822
    %v933 = vunpack.c.h.b16 %v822
    %v934 = vunpack.c.l.b16 %v823
    %v935 = vunpack.c.h.b16 %v823
    %v936 = vunpack.c.l.b16 %v824
    %v937 = vunpack.c.h.b16 %v824
    %v938 = vunpack.c.l.b16 %v825
    %v939 = vunpack.c.h.b16 %v825
    %v940 = vunpack.c.l.b16 %v826
    %v941 = vunpack.c.h.b16 %v826
    %v942 = vunpack.c.l.b16 %v827
    %v943 = vunpack.c.h.b16 %v827
    %v944 = vpack.c.b16 %v884, %v880
    %v945 = vpack.c.b16 %v885, %v881
    %v946 = vpack.c.b16 %v886, %v882
    %v947 = vpack.c.b16 %v887, %v883
    %v948 = vpack.c.b16 %v892, %v888
    %v949 = vpack.c.b16 %v893, %v889
    %v950 = vpack.c.b16 %v894, %v890
    %v951 = vpack.c.b16 %v895, %v891
    %v952 = vpack.c.b16 %v900, %v896
    %v953 = vpack.c.b16 %v901, %v897
    %v954 = vpack.c.b16 %v902, %v898
    %v955 = vpack.c.b16 %v903, %v899
    %v956 = vpack.c.b16 %v908, %v904
    %v957 = vpack.c.b16 %v909, %v905
    %v958 = vpack.c.b16 %v910, %v906
    %v959 = vpack.c.b16 %v911, %v907
    %v960 = vpack.c.b16 %v916, %v912
    %v961 = vpack.c.b16 %v917, %v913
    %v962 = vpack.c.b16 %v918, %v914
    %v963 = vpack.c.b16 %v919, %v915
    %v964 = vpack.c.b16 %v924, %v920
    %v965 = vpack.c.b16 %v925, %v921
    %v966 = vpack.c.b16 %v926, %v922
    %v967 = vpack.c.b16 %v927, %v923
    %v968 = vpack.c.b16 %v932, %v928
    %v969 = vpack.c.b16 %v933, %v929
    %v970 = vpack.c.b16 %v934, %v930
    %v971 = vpack.c.b16 %v935, %v931
    %v972 = vpack.c.b16 %v940, %v936
    %v973 = vpack.c.b16 %v941, %v937
    %v974 = vpack.c.b16 %v942, %v938
    %v975 = vpack.c.b16 %v943, %v939
    %1008 = vmatprep.subr.bf16.mxu0 %v945
    %1009 = vmatpush1.bf16.msra.mxu0 %v944
    %1010 = vmatprep.subr.bf16.mxu0 %v949
    %1011 = vmatpush1.bf16.msra.mxu0 %v948
    %1012 = vmatprep.subr.bf16.mxu0 %v953
    %1013 = vmatpush1.bf16.msra.mxu0 %v952
    %1014 = vmatprep.subr.bf16.mxu0 %v957
    %1015 = vmatpush1.bf16.msra.mxu0 %v956
    %1016 = vmatprep.subr.bf16.mxu0 %v961
    %1017 = vmatpush1.bf16.msra.mxu0 %v960
    %1018 = vmatprep.subr.bf16.mxu0 %v965
    %1019 = vmatpush1.bf16.msra.mxu0 %v964
    %1020 = vmatprep.subr.bf16.mxu0 %v969
    %1021 = vmatpush1.bf16.msra.mxu0 %v968
    %1022 = vmatprep.subr.bf16.mxu0 %v973
    %1023 = vmatpush1.bf16.msra.mxu0 %v972
    %1024 = vmatprep.subr.bf16.mxu0 0
    %1025 = vmatpush1.bf16.msra.mxu0 0
    %1026 = vmatprep.subr.bf16.mxu0 0
    %1027 = vmatpush1.bf16.msra.mxu0 0
    %1028 = vmatprep.subr.bf16.mxu0 0
    %1029 = vmatpush1.bf16.msra.mxu0 0
    %1030 = vmatprep.subr.bf16.mxu0 0
    %1031 = vmatpush1.bf16.msra.mxu0 0
    %1032 = vmatprep.subr.bf16.mxu0 0
    %1033 = vmatpush1.bf16.msra.mxu0 0
    %1034 = vmatprep.subr.bf16.mxu0 0
    %1035 = vmatpush1.bf16.msra.mxu0 0
    %1036 = vmatprep.subr.bf16.mxu0 0
    %1037 = vmatpush1.bf16.msra.mxu0 0
    %1038 = vmatprep.subr.bf16.mxu0 0
    %1039 = vmatpush1.bf16.msra.mxu0 0
    %1040 = vmatprep.mubr.bf16.mxu0 0
    %1041 = vmatmul.mubr.bf16.gmra.mrb[0].mxu0 %v847
    %v1042 = vpop.f32.mrb[0].mxu0
    %v1043 = vadd.f32 0.0, %v1042
    %v1044 = vpop.f32.mrb[0].mxu0
    %v1045 = vadd.f32 0.0, %v1044
    %v1046 = vpop.f32.mrb[0].mxu0
    %v1047 = vadd.f32 0.0, %v1046
    %v1048 = vpop.f32.mrb[0].mxu0
    %v1049 = vadd.f32 0.0, %v1048
    %1050 = vdwg.mxu0
    %1051 = vmatprep.subr.bf16.mxu0 %v947
    %1052 = vmatpush1.bf16.msra.mxu0 %v946
    %1053 = vmatprep.subr.bf16.mxu0 %v951
    %1054 = vmatpush1.bf16.msra.mxu0 %v950
    %1055 = vmatprep.subr.bf16.mxu0 %v955
    %1056 = vmatpush1.bf16.msra.mxu0 %v954
    %1057 = vmatprep.subr.bf16.mxu0 %v959
    %1058 = vmatpush1.bf16.msra.mxu0 %v958
    %1059 = vmatprep.subr.bf16.mxu0 %v963
    %1060 = vmatpush1.bf16.msra.mxu0 %v962
    %1061 = vmatprep.subr.bf16.mxu0 %v967
    %1062 = vmatpush1.bf16.msra.mxu0 %v966
    %1063 = vmatprep.subr.bf16.mxu0 %v971
    %1064 = vmatpush1.bf16.msra.mxu0 %v970
    %1065 = vmatprep.subr.bf16.mxu0 %v975
    %1066 = vmatpush1.bf16.msra.mxu0 %v974
    %1067 = vmatprep.subr.bf16.mxu0 0
    %1068 = vmatpush1.bf16.msra.mxu0 0
    %1069 = vmatprep.subr.bf16.mxu0 0
    %1070 = vmatpush1.bf16.msra.mxu0 0
    %1071 = vmatprep.subr.bf16.mxu0 0
    %1072 = vmatpush1.bf16.msra.mxu0 0
    %1073 = vmatprep.subr.bf16.mxu0 0
    %1074 = vmatpush1.bf16.msra.mxu0 0
    %1075 = vmatprep.subr.bf16.mxu0 0
    %1076 = vmatpush1.bf16.msra.mxu0 0
    %1077 = vmatprep.subr.bf16.mxu0 0
    %1078 = vmatpush1.bf16.msra.mxu0 0
    %1079 = vmatprep.subr.bf16.mxu0 0
    %1080 = vmatpush1.bf16.msra.mxu0 0
    %1081 = vmatprep.subr.bf16.mxu0 0
    %1082 = vmatpush1.bf16.msra.mxu0 0
    %1083 = vmatprep.mubr.bf16.mxu0 0
    %1084 = vmatmul.mubr.bf16.gmra.mrb[0].mxu0 %v847
    %v1085 = vpop.f32.mrb[0].mxu0
    %v1086 = vadd.f32 0.0, %v1085
    %v1087 = vpop.f32.mrb[0].mxu0
    %v1088 = vadd.f32 0.0, %v1087
    %v1089 = vpop.f32.mrb[0].mxu0
    %v1090 = vadd.f32 0.0, %v1089
    %v1091 = vpop.f32.mrb[0].mxu0
    %v1092 = vadd.f32 0.0, %v1091
    %1093 = vdwg.mxu0
    %v1094 = vadd.f32 %v839, %v1043
    %v1095 = vadd.f32 %v840, %v1045
    %v1096 = vadd.f32 %v841, %v1086
    %v1097 = vadd.f32 %v842, %v1088
    %v1098 = vadd.f32 %v843, %v1047
    %v1099 = vadd.f32 %v844, %v1049
    %v1100 = vadd.f32 %v845, %v1090
    %v1101 = vadd.f32 %v846, %v1092
    %v1102 = vmul.f32 %v1094, 0.5
    %v1103 = vmul.f32 %v1098, 0.5
    %v1104 = vtanh.pop %v1102
    %v1105 = vtanh.pop %v1103
    %v1106 = vadd.f32 %v1104, 1.0
    %v1107 = vadd.f32 %v1105, 1.0
    %v1108 = vmul.f32 %v1106, 0.5
    %v1109 = vmul.f32 %v1107, 0.5
    %v1110 = vmul.f32 %v1095, 0.5
    %v1111 = vmul.f32 %v1099, 0.5
    %v1112 = vtanh.pop %v1110
    %v1113 = vtanh.pop %v1111
    %v1114 = vadd.f32 %v1112, 1.0
    %v1115 = vadd.f32 %v1113, 1.0
    %v1116 = vmul.f32 %v1114, 0.5
    %v1117 = vmul.f32 %v1115, 0.5
    %v1118 = vtanh.pop %v1096
    %v1119 = vtanh.pop %v1100
    %v1120 = vmul.f32 %v1097, 0.5
    %v1121 = vmul.f32 %v1101, 0.5
    %v1122 = vtanh.pop %v1120
    %v1123 = vtanh.pop %v1121
    %v1124 = vadd.f32 %v1122, 1.0
    %v1125 = vadd.f32 %v1123, 1.0
    %v1126 = vmul.f32 %v1124, 0.5
    %v1127 = vmul.f32 %v1125, 0.5
    %v1128 = vmul.f32 %v1116, %v830
    %v1129 = vmul.f32 %v1117, %v831
    %v1130 = vmul.f32 %v1108, %v1118
    %v1131 = vmul.f32 %v1109, %v1119
    %v1132 = vadd.f32 %v1128, %v1130
    %v1133 = vadd.f32 %v1129, %v1131
    %v1134 = vtanh.pop %v1132
    %v1135 = vtanh.pop %v1133
    %v1136 = vmul.f32 %v1126, %v1134
    %v1137 = vmul.f32 %v1127, %v1135
    %s1138 = smul.u32 1, 4
    %s1139 = smul.addr %s1138, 8
    %s1140 = scalar_lea.vmem [#allocation4], %s1139
    %v1141 = vld [vmem:[%s1140] sm:$0xff]
    %v1142 = vld [vmem:[%s1140 + $0x8] sm:$0xff]
    %v1143 = vld [vmem:[%s1140 + $0x10] sm:$0xff]
    %v1144 = vld [vmem:[%s1140 + $0x18] sm:$0xff]
    %v1145 = vunpack.c.l.bf16 %v1141
    %v1146 = vunpack.c.l.bf16 %v1142
    %v1147 = vunpack.c.l.bf16 %v1143
    %v1148 = vunpack.c.l.bf16 %v1144
    %v1149 = vunpack.c.h.bf16 %v1141
    %v1150 = vunpack.c.h.bf16 %v1142
    %v1151 = vunpack.c.h.bf16 %v1143
    %v1152 = vunpack.c.h.bf16 %v1144
    %v1153 = vpack.c.bf16 %v1137, %v1136
    %1154 = vmatprep.subr.bf16.mxu0 %v945
    %1155 = vmatpush1.bf16.msra.mxu0 %v944
    %1156 = vmatprep.subr.bf16.mxu0 %v949
    %1157 = vmatpush1.bf16.msra.mxu0 %v948
    %1158 = vmatprep.subr.bf16.mxu0 %v953
    %1159 = vmatpush1.bf16.msra.mxu0 %v952
    %1160 = vmatprep.subr.bf16.mxu0 %v957
    %1161 = vmatpush1.bf16.msra.mxu0 %v956
    %1162 = vmatprep.subr.bf16.mxu0 %v961
    %1163 = vmatpush1.bf16.msra.mxu0 %v960
    %1164 = vmatprep.subr.bf16.mxu0 %v965
    %1165 = vmatpush1.bf16.msra.mxu0 %v964
    %1166 = vmatprep.subr.bf16.mxu0 %v969
    %1167 = vmatpush1.bf16.msra.mxu0 %v968
    %1168 = vmatprep.subr.bf16.mxu0 %v973
    %1169 = vmatpush1.bf16.msra.mxu0 %v972
    %1170 = vmatprep.subr.bf16.mxu0 0
    %1171 = vmatpush1.bf16.msra.mxu0 0
    %1172 = vmatprep.subr.bf16.mxu0 0
    %1173 = vmatpush1.bf16.msra.mxu0 0
    %1174 = vmatprep.subr.bf16.mxu0 0
    %1175 = vmatpush1.bf16.msra.mxu0 0
    %1176 = vmatprep.subr.bf16.mxu0 0
    %1177 = vmatpush1.bf16.msra.mxu0 0
    %1178 = vmatprep.subr.bf16.mxu0 0
    %1179 = vmatpush1.bf16.msra.mxu0 0
    %1180 = vmatprep.subr.bf16.mxu0 0
    %1181 = vmatpush1.bf16.msra.mxu0 0
    %1182 = vmatprep.subr.bf16.mxu0 0
    %1183 = vmatpush1.bf16.msra.mxu0 0
    %1184 = vmatprep.subr.bf16.mxu0 0
    %1185 = vmatpush1.bf16.msra.mxu0 0
    %1186 = vmatprep.mubr.bf16.mxu0 0
    %1187 = vmatmul.mubr.bf16.gmra.mrb[0].mxu0 %v1153
    %v1188 = vpop.f32.mrb[0].mxu0
    %v1189 = vadd.f32 0.0, %v1188
    %v1190 = vpop.f32.mrb[0].mxu0
    %v1191 = vadd.f32 0.0, %v1190
    %v1192 = vpop.f32.mrb[0].mxu0
    %v1193 = vadd.f32 0.0, %v1192
    %v1194 = vpop.f32.mrb[0].mxu0
    %v1195 = vadd.f32 0.0, %v1194
    %1196 = vdwg.mxu0
    %1197 = vmatprep.subr.bf16.mxu0 %v947
    %1198 = vmatpush1.bf16.msra.mxu0 %v946
    %1199 = vmatprep.subr.bf16.mxu0 %v951
    %1200 = vmatpush1.bf16.msra.mxu0 %v950
    %1201 = vmatprep.subr.bf16.mxu0 %v955
    %1202 = vmatpush1.bf16.msra.mxu0 %v954
    %1203 = vmatprep.subr.bf16.mxu0 %v959
    %1204 = vmatpush1.bf16.msra.mxu0 %v958
    %1205 = vmatprep.subr.bf16.mxu0 %v963
    %1206 = vmatpush1.bf16.msra.mxu0 %v962
    %1207 = vmatprep.subr.bf16.mxu0 %v967
    %1208 = vmatpush1.bf16.msra.mxu0 %v966
    %1209 = vmatprep.subr.bf16.mxu0 %v971
    %1210 = vmatpush1.bf16.msra.mxu0 %v970
    %1211 = vmatprep.subr.bf16.mxu0 %v975
    %1212 = vmatpush1.bf16.msra.mxu0 %v974
    %1213 = vmatprep.subr.bf16.mxu0 0
    %1214 = vmatpush1.bf16.msra.mxu0 0
    %1215 = vmatprep.subr.bf16.mxu0 0
    %1216 = vmatpush1.bf16.msra.mxu0 0
    %1217 = vmatprep.subr.bf16.mxu0 0
    %1218 = vmatpush1.bf16.msra.mxu0 0
    %1219 = vmatprep.subr.bf16.mxu0 0
    %1220 = vmatpush1.bf16.msra.mxu0 0
    %1221 = vmatprep.subr.bf16.mxu0 0
    %1222 = vmatpush1.bf16.msra.mxu0 0
    %1223 = vmatprep.subr.bf16.mxu0 0
    %1224 = vmatpush1.bf16.msra.mxu0 0
    %1225 = vmatprep.subr.bf16.mxu0 0
    %1226 = vmatpush1.bf16.msra.mxu0 0
    %1227 = vmatprep.subr.bf16.mxu0 0
    %1228 = vmatpush1.bf16.msra.mxu0 0
    %1229 = vmatprep.mubr.bf16.mxu0 0
    %1230 = vmatmul.mubr.bf16.gmra.mrb[0].mxu0 %v1153
    %v1231 = vpop.f32.mrb[0].mxu0
    %v1232 = vadd.f32 0.0, %v1231
    %v1233 = vpop.f32.mrb[0].mxu0
    %v1234 = vadd.f32 0.0, %v1233
    %v1235 = vpop.f32.mrb[0].mxu0
    %v1236 = vadd.f32 0.0, %v1235
    %v1237 = vpop.f32.mrb[0].mxu0
    %v1238 = vadd.f32 0.0, %v1237
    %1239 = vdwg.mxu0
    %v1240 = vadd.f32 %v1145, %v1189
    %v1241 = vadd.f32 %v1146, %v1191
    %v1242 = vadd.f32 %v1147, %v1232
    %v1243 = vadd.f32 %v1148, %v1234
    %v1244 = vadd.f32 %v1149, %v1193
    %v1245 = vadd.f32 %v1150, %v1195
    %v1246 = vadd.f32 %v1151, %v1236
    %v1247 = vadd.f32 %v1152, %v1238
    %v1248 = vmul.f32 %v1240, 0.5
    %v1249 = vmul.f32 %v1244, 0.5
    %v1250 = vtanh.pop %v1248
    %v1251 = vtanh.pop %v1249
    %v1252 = vadd.f32 %v1250, 1.0
    %v1253 = vadd.f32 %v1251, 1.0
    %v1254 = vmul.f32 %v1252, 0.5
    %v1255 = vmul.f32 %v1253, 0.5
    %v1256 = vmul.f32 %v1241, 0.5
    %v1257 = vmul.f32 %v1245, 0.5
    %v1258 = vtanh.pop %v1256
    %v1259 = vtanh.pop %v1257
    %v1260 = vadd.f32 %v1258, 1.0
    %v1261 = vadd.f32 %v1259, 1.0
    %v1262 = vmul.f32 %v1260, 0.5
    %v1263 = vmul.f32 %v1261, 0.5
    %v1264 = vtanh.pop %v1242
    %v1265 = vtanh.pop %v1246
    %v1266 = vmul.f32 %v1243, 0.5
    %v1267 = vmul.f32 %v1247, 0.5
    %v1268 = vtanh.pop %v1266
    %v1269 = vtanh.pop %v1267
    %v1270 = vadd.f32 %v1268, 1.0
    %v1271 = vadd.f32 %v1269, 1.0
    %v1272 = vmul.f32 %v1270, 0.5
    %v1273 = vmul.f32 %v1271, 0.5
    %v1274 = vmul.f32 %v1262, %v1132
    %v1275 = vmul.f32 %v1263, %v1133
    %v1276 = vmul.f32 %v1254, %v1264
    %v1277 = vmul.f32 %v1255, %v1265
    %v1278 = vadd.f32 %v1274, %v1276
    %v1279 = vadd.f32 %v1275, %v1277
    %v1280 = vtanh.pop %v1278
    %v1281 = vtanh.pop %v1279
    %v1282 = vmul.f32 %v1272, %v1280
    %v1283 = vmul.f32 %v1273, %v1281
    %s1284 = smul.u32 2, 4
    %s1285 = smul.addr %s1284, 8
    %s1286 = scalar_lea.vmem [#allocation4], %s1285
    %v1287 = vld [vmem:[%s1286] sm:$0xff]
    %v1288 = vld [vmem:[%s1286 + $0x8] sm:$0xff]
    %v1289 = vld [vmem:[%s1286 + $0x10] sm:$0xff]
    %v1290 = vld [vmem:[%s1286 + $0x18] sm:$0xff]
    %v1291 = vunpack.c.l.bf16 %v1287
    %v1292 = vunpack.c.l.bf16 %v1288
    %v1293 = vunpack.c.l.bf16 %v1289
    %v1294 = vunpack.c.l.bf16 %v1290
    %v1295 = vunpack.c.h.bf16 %v1287
    %v1296 = vunpack.c.h.bf16 %v1288
    %v1297 = vunpack.c.h.bf16 %v1289
    %v1298 = vunpack.c.h.bf16 %v1290
    %v1299 = vpack.c.bf16 %v1283, %v1282
    %1300 = vmatprep.subr.bf16.mxu0 %v945
    %1301 = vmatpush1.bf16.msra.mxu0 %v944
    %1302 = vmatprep.subr.bf16.mxu0 %v949
    %1303 = vmatpush1.bf16.msra.mxu0 %v948
    %1304 = vmatprep.subr.bf16.mxu0 %v953
    %1305 = vmatpush1.bf16.msra.mxu0 %v952
    %1306 = vmatprep.subr.bf16.mxu0 %v957
    %1307 = vmatpush1.bf16.msra.mxu0 %v956
    %1308 = vmatprep.subr.bf16.mxu0 %v961
    %1309 = vmatpush1.bf16.msra.mxu0 %v960
    %1310 = vmatprep.subr.bf16.mxu0 %v965
    %1311 = vmatpush1.bf16.msra.mxu0 %v964
    %1312 = vmatprep.subr.bf16.mxu0 %v969
    %1313 = vmatpush1.bf16.msra.mxu0 %v968
    %1314 = vmatprep.subr.bf16.mxu0 %v973
    %1315 = vmatpush1.bf16.msra.mxu0 %v972
    %1316 = vmatprep.subr.bf16.mxu0 0
    %1317 = vmatpush1.bf16.msra.mxu0 0
    %1318 = vmatprep.subr.bf16.mxu0 0
    %1319 = vmatpush1.bf16.msra.mxu0 0
    %1320 = vmatprep.subr.bf16.mxu0 0
    %1321 = vmatpush1.bf16.msra.mxu0 0
    %1322 = vmatprep.subr.bf16.mxu0 0
    %1323 = vmatpush1.bf16.msra.mxu0 0
    %1324 = vmatprep.subr.bf16.mxu0 0
    %1325 = vmatpush1.bf16.msra.mxu0 0
    %1326 = vmatprep.subr.bf16.mxu0 0
    %1327 = vmatpush1.bf16.msra.mxu0 0
    %1328 = vmatprep.subr.bf16.mxu0 0
    %1329 = vmatpush1.bf16.msra.mxu0 0
    %1330 = vmatprep.subr.bf16.mxu0 0
    %1331 = vmatpush1.bf16.msra.mxu0 0
    %1332 = vmatprep.mubr.bf16.mxu0 0
    %1333 = vmatmul.mubr.bf16.gmra.mrb[0].mxu0 %v1299
    %v1334 = vpop.f32.mrb[0].mxu0
    %v1335 = vadd.f32 0.0, %v1334
    %v1336 = vpop.f32.mrb[0].mxu0
    %v1337 = vadd.f32 0.0, %v1336
    %v1338 = vpop.f32.mrb[0].mxu0
    %v1339 = vadd.f32 0.0, %v1338
    %v1340 = vpop.f32.mrb[0].mxu0
    %v1341 = vadd.f32 0.0, %v1340
    %1342 = vdwg.mxu0
    %1343 = vmatprep.subr.bf16.mxu0 %v947
    %1344 = vmatpush1.bf16.msra.mxu0 %v946
    %1345 = vmatprep.subr.bf16.mxu0 %v951
    %1346 = vmatpush1.bf16.msra.mxu0 %v950
    %1347 = vmatprep.subr.bf16.mxu0 %v955
    %1348 = vmatpush1.bf16.msra.mxu0 %v954
    %1349 = vmatprep.subr.bf16.mxu0 %v959
    %1350 = vmatpush1.bf16.msra.mxu0 %v958
    %1351 = vmatprep.subr.bf16.mxu0 %v963
    %1352 = vmatpush1.bf16.msra.mxu0 %v962
    %1353 = vmatprep.subr.bf16.mxu0 %v967
    %1354 = vmatpush1.bf16.msra.mxu0 %v966
    %1355 = vmatprep.subr.bf16.mxu0 %v971
    %1356 = vmatpush1.bf16.msra.mxu0 %v970
    %1357 = vmatprep.subr.bf16.mxu0 %v975
    %1358 = vmatpush1.bf16.msra.mxu0 %v974
    %1359 = vmatprep.subr.bf16.mxu0 0
    %1360 = vmatpush1.bf16.msra.mxu0 0
    %1361 = vmatprep.subr.bf16.mxu0 0
    %1362 = vmatpush1.bf16.msra.mxu0 0
    %1363 = vmatprep.subr.bf16.mxu0 0
    %1364 = vmatpush1.bf16.msra.mxu0 0
    %1365 = vmatprep.subr.bf16.mxu0 0
    %1366 = vmatpush1.bf16.msra.mxu0 0
    %1367 = vmatprep.subr.bf16.mxu0 0
    %1368 = vmatpush1.bf16.msra.mxu0 0
    %1369 = vmatprep.subr.bf16.mxu0 0
    %1370 = vmatpush1.bf16.msra.mxu0 0
    %1371 = vmatprep.subr.bf16.mxu0 0
    %1372 = vmatpush1.bf16.msra.mxu0 0
    %1373 = vmatprep.subr.bf16.mxu0 0
    %1374 = vmatpush1.bf16.msra.mxu0 0
    %1375 = vmatprep.mubr.bf16.mxu0 0
    %1376 = vmatmul.mubr.bf16.gmra.mrb[0].mxu0 %v1299
    %v1377 = vpop.f32.mrb[0].mxu0
    %v1378 = vadd.f32 0.0, %v1377
    %v1379 = vpop.f32.mrb[0].mxu0
    %v1380 = vadd.f32 0.0, %v1379
    %v1381 = vpop.f32.mrb[0].mxu0
    %v1382 = vadd.f32 0.0, %v1381
    %v1383 = vpop.f32.mrb[0].mxu0
    %v1384 = vadd.f32 0.0, %v1383
    %1385 = vdwg.mxu0
    %v1386 = vadd.f32 %v1291, %v1335
    %v1387 = vadd.f32 %v1292, %v1337
    %v1388 = vadd.f32 %v1293, %v1378
    %v1389 = vadd.f32 %v1294, %v1380
    %v1390 = vadd.f32 %v1295, %v1339
    %v1391 = vadd.f32 %v1296, %v1341
    %v1392 = vadd.f32 %v1297, %v1382
    %v1393 = vadd.f32 %v1298, %v1384
    %v1394 = vmul.f32 %v1386, 0.5
    %v1395 = vmul.f32 %v1390, 0.5
    %v1396 = vtanh.pop %v1394
    %v1397 = vtanh.pop %v1395
    %v1398 = vadd.f32 %v1396, 1.0
    %v1399 = vadd.f32 %v1397, 1.0
    %v1400 = vmul.f32 %v1398, 0.5
    %v1401 = vmul.f32 %v1399, 0.5
    %v1402 = vmul.f32 %v1387, 0.5
    %v1403 = vmul.f32 %v1391, 0.5
    %v1404 = vtanh.pop %v1402
    %v1405 = vtanh.pop %v1403
    %v1406 = vadd.f32 %v1404, 1.0
    %v1407 = vadd.f32 %v1405, 1.0
    %v1408 = vmul.f32 %v1406, 0.5
    %v1409 = vmul.f32 %v1407, 0.5
    %v1410 = vtanh.pop %v1388
    %v1411 = vtanh.pop %v1392
    %v1412 = vmul.f32 %v1389, 0.5
    %v1413 = vmul.f32 %v1393, 0.5
    %v1414 = vtanh.pop %v1412
    %v1415 = vtanh.pop %v1413
    %v1416 = vadd.f32 %v1414, 1.0
    %v1417 = vadd.f32 %v1415, 1.0
    %v1418 = vmul.f32 %v1416, 0.5
    %v1419 = vmul.f32 %v1417, 0.5
    %v1420 = vmul.f32 %v1408, %v1278
    %v1421 = vmul.f32 %v1409, %v1279
    %v1422 = vmul.f32 %v1400, %v1410
    %v1423 = vmul.f32 %v1401, %v1411
    %v1424 = vadd.f32 %v1420, %v1422
    %v1425 = vadd.f32 %v1421, %v1423
    %v1426 = vtanh.pop %v1424
    %v1427 = vtanh.pop %v1425
    %v1428 = vmul.f32 %v1418, %v1426
    %v1429 = vmul.f32 %v1419, %v1427
    %s1430 = smul.u32 3, 4
    %s1431 = smul.addr %s1430, 8
    %s1432 = scalar_lea.vmem [#allocation4], %s1431
    %v1433 = vld [vmem:[%s1432] sm:$0xff]
    %v1434 = vld [vmem:[%s1432 + $0x8] sm:$0xff]
    %v1435 = vld [vmem:[%s1432 + $0x10] sm:$0xff]
    %v1436 = vld [vmem:[%s1432 + $0x18] sm:$0xff]
    %v1437 = vunpack.c.l.bf16 %v1433
    %v1438 = vunpack.c.l.bf16 %v1434
    %v1439 = vunpack.c.l.bf16 %v1435
    %v1440 = vunpack.c.l.bf16 %v1436
    %v1441 = vunpack.c.h.bf16 %v1433
    %v1442 = vunpack.c.h.bf16 %v1434
    %v1443 = vunpack.c.h.bf16 %v1435
    %v1444 = vunpack.c.h.bf16 %v1436
    %v1445 = vpack.c.bf16 %v1429, %v1428
    %1446 = vmatprep.subr.bf16.mxu0 %v945
    %1447 = vmatpush1.bf16.msra.mxu0 %v944
    %1448 = vmatprep.subr.bf16.mxu0 %v949
    %1449 = vmatpush1.bf16.msra.mxu0 %v948
    %1450 = vmatprep.subr.bf16.mxu0 %v953
    %1451 = vmatpush1.bf16.msra.mxu0 %v952
    %1452 = vmatprep.subr.bf16.mxu0 %v957
    %1453 = vmatpush1.bf16.msra.mxu0 %v956
    %1454 = vmatprep.subr.bf16.mxu0 %v961
    %1455 = vmatpush1.bf16.msra.mxu0 %v960
    %1456 = vmatprep.subr.bf16.mxu0 %v965
    %1457 = vmatpush1.bf16.msra.mxu0 %v964
    %1458 = vmatprep.subr.bf16.mxu0 %v969
    %1459 = vmatpush1.bf16.msra.mxu0 %v968
    %1460 = vmatprep.subr.bf16.mxu0 %v973
    %1461 = vmatpush1.bf16.msra.mxu0 %v972
    %1462 = vmatprep.subr.bf16.mxu0 0
    %1463 = vmatpush1.bf16.msra.mxu0 0
    %1464 = vmatprep.subr.bf16.mxu0 0
    %1465 = vmatpush1.bf16.msra.mxu0 0
    %1466 = vmatprep.subr.bf16.mxu0 0
    %1467 = vmatpush1.bf16.msra.mxu0 0
    %1468 = vmatprep.subr.bf16.mxu0 0
    %1469 = vmatpush1.bf16.msra.mxu0 0
    %1470 = vmatprep.subr.bf16.mxu0 0
    %1471 = vmatpush1.bf16.msra.mxu0 0
    %1472 = vmatprep.subr.bf16.mxu0 0
    %1473 = vmatpush1.bf16.msra.mxu0 0
    %1474 = vmatprep.subr.bf16.mxu0 0
    %1475 = vmatpush1.bf16.msra.mxu0 0
    %1476 = vmatprep.subr.bf16.mxu0 0
    %1477 = vmatpush1.bf16.msra.mxu0 0
    %1478 = vmatprep.mubr.bf16.mxu0 0
    %1479 = vmatmul.mubr.bf16.gmra.mrb[0].mxu0 %v1445
    %v1480 = vpop.f32.mrb[0].mxu0
    %v1481 = vadd.f32 0.0, %v1480
    %v1482 = vpop.f32.mrb[0].mxu0
    %v1483 = vadd.f32 0.0, %v1482
    %v1484 = vpop.f32.mrb[0].mxu0
    %v1485 = vadd.f32 0.0, %v1484
    %v1486 = vpop.f32.mrb[0].mxu0
    %v1487 = vadd.f32 0.0, %v1486
    %1488 = vdwg.mxu0
    %1489 = vmatprep.subr.bf16.mxu0 %v947
    %1490 = vmatpush1.bf16.msra.mxu0 %v946
    %1491 = vmatprep.subr.bf16.mxu0 %v951
    %1492 = vmatpush1.bf16.msra.mxu0 %v950
    %1493 = vmatprep.subr.bf16.mxu0 %v955
    %1494 = vmatpush1.bf16.msra.mxu0 %v954
    %1495 = vmatprep.subr.bf16.mxu0 %v959
    %1496 = vmatpush1.bf16.msra.mxu0 %v958
    %1497 = vmatprep.subr.bf16.mxu0 %v963
    %1498 = vmatpush1.bf16.msra.mxu0 %v962
    %1499 = vmatprep.subr.bf16.mxu0 %v967
    %1500 = vmatpush1.bf16.msra.mxu0 %v966
    %1501 = vmatprep.subr.bf16.mxu0 %v971
    %1502 = vmatpush1.bf16.msra.mxu0 %v970
    %1503 = vmatprep.subr.bf16.mxu0 %v975
    %1504 = vmatpush1.bf16.msra.mxu0 %v974
    %1505 = vmatprep.subr.bf16.mxu0 0
    %1506 = vmatpush1.bf16.msra.mxu0 0
    %1507 = vmatprep.subr.bf16.mxu0 0
    %1508 = vmatpush1.bf16.msra.mxu0 0
    %1509 = vmatprep.subr.bf16.mxu0 0
    %1510 = vmatpush1.bf16.msra.mxu0 0
    %1511 = vmatprep.subr.bf16.mxu0 0
    %1512 = vmatpush1.bf16.msra.mxu0 0
    %1513 = vmatprep.subr.bf16.mxu0 0
    %1514 = vmatpush1.bf16.msra.mxu0 0
    %1515 = vmatprep.subr.bf16.mxu0 0
    %1516 = vmatpush1.bf16.msra.mxu0 0
    %1517 = vmatprep.subr.bf16.mxu0 0
    %1518 = vmatpush1.bf16.msra.mxu0 0
    %1519 = vmatprep.subr.bf16.mxu0 0
    %1520 = vmatpush1.bf16.msra.mxu0 0
    %1521 = vmatprep.mubr.bf16.mxu0 0
    %1522 = vmatmul.mubr.bf16.gmra.mrb[0].mxu0 %v1445
    %v1523 = vpop.f32.mrb[0].mxu0
    %v1524 = vadd.f32 0.0, %v1523
    %v1525 = vpop.f32.mrb[0].mxu0
    %v1526 = vadd.f32 0.0, %v1525
    %v1527 = vpop.f32.mrb[0].mxu0
    %v1528 = vadd.f32 0.0, %v1527
    %v1529 = vpop.f32.mrb[0].mxu0
    %v1530 = vadd.f32 0.0, %v1529
    %1531 = vdwg.mxu0
    %v1532 = vadd.f32 %v1437, %v1481
    %v1533 = vadd.f32 %v1438, %v1483
    %v1534 = vadd.f32 %v1439, %v1524
    %v1535 = vadd.f32 %v1440, %v1526
    %v1536 = vadd.f32 %v1441, %v1485
    %v1537 = vadd.f32 %v1442, %v1487
    %v1538 = vadd.f32 %v1443, %v1528
    %v1539 = vadd.f32 %v1444, %v1530
    %v1540 = vmul.f32 %v1532, 0.5
    %v1541 = vmul.f32 %v1536, 0.5
    %v1542 = vtanh.pop %v1540
    %v1543 = vtanh.pop %v1541
    %v1544 = vadd.f32 %v1542, 1.0
    %v1545 = vadd.f32 %v1543, 1.0
    %v1546 = vmul.f32 %v1544, 0.5
    %v1547 = vmul.f32 %v1545, 0.5
    %v1548 = vmul.f32 %v1533, 0.5
    %v1549 = vmul.f32 %v1537, 0.5
    %v1550 = vtanh.pop %v1548
    %v1551 = vtanh.pop %v1549
    %v1552 = vadd.f32 %v1550, 1.0
    %v1553 = vadd.f32 %v1551, 1.0
    %v1554 = vmul.f32 %v1552, 0.5
    %v1555 = vmul.f32 %v1553, 0.5
    %v1556 = vtanh.pop %v1534
    %v1557 = vtanh.pop %v1538
    %v1558 = vmul.f32 %v1535, 0.5
    %v1559 = vmul.f32 %v1539, 0.5
    %v1560 = vtanh.pop %v1558
    %v1561 = vtanh.pop %v1559
    %v1562 = vadd.f32 %v1560, 1.0
    %v1563 = vadd.f32 %v1561, 1.0
    %v1564 = vmul.f32 %v1562, 0.5
    %v1565 = vmul.f32 %v1563, 0.5
    %v1566 = vmul.f32 %v1554, %v1424
    %v1567 = vmul.f32 %v1555, %v1425
    %v1568 = vmul.f32 %v1546, %v1556
    %v1569 = vmul.f32 %v1547, %v1557
    %v1570 = vadd.f32 %v1566, %v1568
    %v1571 = vadd.f32 %v1567, %v1569
    %v1572 = vtanh.pop %v1570
    %v1573 = vtanh.pop %v1571
    %v1574 = vmul.f32 %v1564, %v1572
    %v1575 = vmul.f32 %v1565, %v1573
    %s1576 = smul.u32 4, 4
    %s1577 = smul.addr %s1576, 8
    %s1578 = scalar_lea.vmem [#allocation4], %s1577
    %v1579 = vld [vmem:[%s1578] sm:$0xff]
    %v1580 = vld [vmem:[%s1578 + $0x8] sm:$0xff]
    %v1581 = vld [vmem:[%s1578 + $0x10] sm:$0xff]
    %v1582 = vld [vmem:[%s1578 + $0x18] sm:$0xff]
    %v1583 = vunpack.c.l.bf16 %v1579
    %v1584 = vunpack.c.l.bf16 %v1580
    %v1585 = vunpack.c.l.bf16 %v1581
    %v1586 = vunpack.c.l.bf16 %v1582
    %v1587 = vunpack.c.h.bf16 %v1579
    %v1588 = vunpack.c.h.bf16 %v1580
    %v1589 = vunpack.c.h.bf16 %v1581
    %v1590 = vunpack.c.h.bf16 %v1582
    %v1591 = vpack.c.bf16 %v1575, %v1574
    %1592 = vmatprep.subr.bf16.mxu0 %v945
    %1593 = vmatpush1.bf16.msra.mxu0 %v944
    %1594 = vmatprep.subr.bf16.mxu0 %v949
    %1595 = vmatpush1.bf16.msra.mxu0 %v948
    %1596 = vmatprep.subr.bf16.mxu0 %v953
    %1597 = vmatpush1.bf16.msra.mxu0 %v952
    %1598 = vmatprep.subr.bf16.mxu0 %v957
    %1599 = vmatpush1.bf16.msra.mxu0 %v956
    %1600 = vmatprep.subr.bf16.mxu0 %v961
    %1601 = vmatpush1.bf16.msra.mxu0 %v960
    %1602 = vmatprep.subr.bf16.mxu0 %v965
    %1603 = vmatpush1.bf16.msra.mxu0 %v964
    %1604 = vmatprep.subr.bf16.mxu0 %v969
    %1605 = vmatpush1.bf16.msra.mxu0 %v968
    %1606 = vmatprep.subr.bf16.mxu0 %v973
    %1607 = vmatpush1.bf16.msra.mxu0 %v972
    %1608 = vmatprep.subr.bf16.mxu0 0
    %1609 = vmatpush1.bf16.msra.mxu0 0
    %1610 = vmatprep.subr.bf16.mxu0 0
    %1611 = vmatpush1.bf16.msra.mxu0 0
    %1612 = vmatprep.subr.bf16.mxu0 0
    %1613 = vmatpush1.bf16.msra.mxu0 0
    %1614 = vmatprep.subr.bf16.mxu0 0
    %1615 = vmatpush1.bf16.msra.mxu0 0
    %1616 = vmatprep.subr.bf16.mxu0 0
    %1617 = vmatpush1.bf16.msra.mxu0 0
    %1618 = vmatprep.subr.bf16.mxu0 0
    %1619 = vmatpush1.bf16.msra.mxu0 0
    %1620 = vmatprep.subr.bf16.mxu0 0
    %1621 = vmatpush1.bf16.msra.mxu0 0
    %1622 = vmatprep.subr.bf16.mxu0 0
    %1623 = vmatpush1.bf16.msra.mxu0 0
    %1624 = vmatprep.mubr.bf16.mxu0 0
    %1625 = vmatmul.mubr.bf16.gmra.mrb[0].mxu0 %v1591
    %v1626 = vpop.f32.mrb[0].mxu0
    %v1627 = vadd.f32 0.0, %v1626
    %v1628 = vpop.f32.mrb[0].mxu0
    %v1629 = vadd.f32 0.0, %v1628
    %v1630 = vpop.f32.mrb[0].mxu0
    %v1631 = vadd.f32 0.0, %v1630
    %v1632 = vpop.f32.mrb[0].mxu0
    %v1633 = vadd.f32 0.0, %v1632
    %1634 = vdwg.mxu0
    %1635 = vmatprep.subr.bf16.mxu0 %v947
    %1636 = vmatpush1.bf16.msra.mxu0 %v946
    %1637 = vmatprep.subr.bf16.mxu0 %v951
    %1638 = vmatpush1.bf16.msra.mxu0 %v950
    %1639 = vmatprep.subr.bf16.mxu0 %v955
    %1640 = vmatpush1.bf16.msra.mxu0 %v954
    %1641 = vmatprep.subr.bf16.mxu0 %v959
    %1642 = vmatpush1.bf16.msra.mxu0 %v958
    %1643 = vmatprep.subr.bf16.mxu0 %v963
    %1644 = vmatpush1.bf16.msra.mxu0 %v962
    %1645 = vmatprep.subr.bf16.mxu0 %v967
    %1646 = vmatpush1.bf16.msra.mxu0 %v966
    %1647 = vmatprep.subr.bf16.mxu0 %v971
    %1648 = vmatpush1.bf16.msra.mxu0 %v970
    %1649 = vmatprep.subr.bf16.mxu0 %v975
    %1650 = vmatpush1.bf16.msra.mxu0 %v974
    %1651 = vmatprep.subr.bf16.mxu0 0
    %1652 = vmatpush1.bf16.msra.mxu0 0
    %1653 = vmatprep.subr.bf16.mxu0 0
    %1654 = vmatpush1.bf16.msra.mxu0 0
    %1655 = vmatprep.subr.bf16.mxu0 0
    %1656 = vmatpush1.bf16.msra.mxu0 0
    %1657 = vmatprep.subr.bf16.mxu0 0
    %1658 = vmatpush1.bf16.msra.mxu0 0
    %1659 = vmatprep.subr.bf16.mxu0 0
    %1660 = vmatpush1.bf16.msra.mxu0 0
    %1661 = vmatprep.subr.bf16.mxu0 0
    %1662 = vmatpush1.bf16.msra.mxu0 0
    %1663 = vmatprep.subr.bf16.mxu0 0
    %1664 = vmatpush1.bf16.msra.mxu0 0
    %1665 = vmatprep.subr.bf16.mxu0 0
    %1666 = vmatpush1.bf16.msra.mxu0 0
    %1667 = vmatprep.mubr.bf16.mxu0 0
    %1668 = vmatmul.mubr.bf16.gmra.mrb[0].mxu0 %v1591
    %v1669 = vpop.f32.mrb[0].mxu0
    %v1670 = vadd.f32 0.0, %v1669
    %v1671 = vpop.f32.mrb[0].mxu0
    %v1672 = vadd.f32 0.0, %v1671
    %v1673 = vpop.f32.mrb[0].mxu0
    %v1674 = vadd.f32 0.0, %v1673
    %v1675 = vpop.f32.mrb[0].mxu0
    %v1676 = vadd.f32 0.0, %v1675
    %1677 = vdwg.mxu0
    %v1678 = vadd.f32 %v1583, %v1627
    %v1679 = vadd.f32 %v1584, %v1629
    %v1680 = vadd.f32 %v1585, %v1670
    %v1681 = vadd.f32 %v1586, %v1672
    %v1682 = vadd.f32 %v1587, %v1631
    %v1683 = vadd.f32 %v1588, %v1633
    %v1684 = vadd.f32 %v1589, %v1674
    %v1685 = vadd.f32 %v1590, %v1676
    %v1686 = vmul.f32 %v1678, 0.5
    %v1687 = vmul.f32 %v1682, 0.5
    %v1688 = vtanh.pop %v1686
    %v1689 = vtanh.pop %v1687
    %v1690 = vadd.f32 %v1688, 1.0
    %v1691 = vadd.f32 %v1689, 1.0
    %v1692 = vmul.f32 %v1690, 0.5
    %v1693 = vmul.f32 %v1691, 0.5
    %v1694 = vmul.f32 %v1679, 0.5
    %v1695 = vmul.f32 %v1683, 0.5
    %v1696 = vtanh.pop %v1694
    %v1697 = vtanh.pop %v1695
    %v1698 = vadd.f32 %v1696, 1.0
    %v1699 = vadd.f32 %v1697, 1.0
    %v1700 = vmul.f32 %v1698, 0.5
    %v1701 = vmul.f32 %v1699, 0.5
    %v1702 = vtanh.pop %v1680
    %v1703 = vtanh.pop %v1684
    %v1704 = vmul.f32 %v1681, 0.5
    %v1705 = vmul.f32 %v1685, 0.5
    %v1706 = vtanh.pop %v1704
    %v1707 = vtanh.pop %v1705
    %v1708 = vadd.f32 %v1706, 1.0
    %v1709 = vadd.f32 %v1707, 1.0
    %v1710 = vmul.f32 %v1708, 0.5
    %v1711 = vmul.f32 %v1709, 0.5
    %v1712 = vmul.f32 %v1700, %v1570
    %v1713 = vmul.f32 %v1701, %v1571
    %v1714 = vmul.f32 %v1692, %v1702
    %v1715 = vmul.f32 %v1693, %v1703
    %v1716 = vadd.f32 %v1712, %v1714
    %v1717 = vadd.f32 %v1713, %v1715
    %v1718 = vtanh.pop %v1716
    %v1719 = vtanh.pop %v1717
    %v1720 = vmul.f32 %v1710, %v1718
    %v1721 = vmul.f32 %v1711, %v1719
    %s1722 = smul.u32 5, 4
    %s1723 = smul.addr %s1722, 8
    %s1724 = scalar_lea.vmem [#allocation4], %s1723
    %v1725 = vld [vmem:[%s1724] sm:$0xff]
    %v1726 = vld [vmem:[%s1724 + $0x8] sm:$0xff]
    %v1727 = vld [vmem:[%s1724 + $0x10] sm:$0xff]
    %v1728 = vld [vmem:[%s1724 + $0x18] sm:$0xff]
    %v1729 = vunpack.c.l.bf16 %v1725
    %v1730 = vunpack.c.l.bf16 %v1726
    %v1731 = vunpack.c.l.bf16 %v1727
    %v1732 = vunpack.c.l.bf16 %v1728
    %v1733 = vunpack.c.h.bf16 %v1725
    %v1734 = vunpack.c.h.bf16 %v1726
    %v1735 = vunpack.c.h.bf16 %v1727
    %v1736 = vunpack.c.h.bf16 %v1728
    %v1737 = vpack.c.bf16 %v1721, %v1720
    %1738 = vmatprep.subr.bf16.mxu0 %v945
    %1739 = vmatpush1.bf16.msra.mxu0 %v944
    %1740 = vmatprep.subr.bf16.mxu0 %v949
    %1741 = vmatpush1.bf16.msra.mxu0 %v948
    %1742 = vmatprep.subr.bf16.mxu0 %v953
    %1743 = vmatpush1.bf16.msra.mxu0 %v952
    %1744 = vmatprep.subr.bf16.mxu0 %v957
    %1745 = vmatpush1.bf16.msra.mxu0 %v956
    %1746 = vmatprep.subr.bf16.mxu0 %v961
    %1747 = vmatpush1.bf16.msra.mxu0 %v960
    %1748 = vmatprep.subr.bf16.mxu0 %v965
    %1749 = vmatpush1.bf16.msra.mxu0 %v964
    %1750 = vmatprep.subr.bf16.mxu0 %v969
    %1751 = vmatpush1.bf16.msra.mxu0 %v968
    %1752 = vmatprep.subr.bf16.mxu0 %v973
    %1753 = vmatpush1.bf16.msra.mxu0 %v972
    %1754 = vmatprep.subr.bf16.mxu0 0
    %1755 = vmatpush1.bf16.msra.mxu0 0
    %1756 = vmatprep.subr.bf16.mxu0 0
    %1757 = vmatpush1.bf16.msra.mxu0 0
    %1758 = vmatprep.subr.bf16.mxu0 0
    %1759 = vmatpush1.bf16.msra.mxu0 0
    %1760 = vmatprep.subr.bf16.mxu0 0
    %1761 = vmatpush1.bf16.msra.mxu0 0
    %1762 = vmatprep.subr.bf16.mxu0 0
    %1763 = vmatpush1.bf16.msra.mxu0 0
    %1764 = vmatprep.subr.bf16.mxu0 0
    %1765 = vmatpush1.bf16.msra.mxu0 0
    %1766 = vmatprep.subr.bf16.mxu0 0
    %1767 = vmatpush1.bf16.msra.mxu0 0
    %1768 = vmatprep.subr.bf16.mxu0 0
    %1769 = vmatpush1.bf16.msra.mxu0 0
    %1770 = vmatprep.mubr.bf16.mxu0 0
    %1771 = vmatmul.mubr.bf16.gmra.mrb[0].mxu0 %v1737
    %v1772 = vpop.f32.mrb[0].mxu0
    %v1773 = vadd.f32 0.0, %v1772
    %v1774 = vpop.f32.mrb[0].mxu0
    %v1775 = vadd.f32 0.0, %v1774
    %v1776 = vpop.f32.mrb[0].mxu0
    %v1777 = vadd.f32 0.0, %v1776
    %v1778 = vpop.f32.mrb[0].mxu0
    %v1779 = vadd.f32 0.0, %v1778
    %1780 = vdwg.mxu0
    %1781 = vmatprep.subr.bf16.mxu0 %v947
    %1782 = vmatpush1.bf16.msra.mxu0 %v946
    %1783 = vmatprep.subr.bf16.mxu0 %v951
    %1784 = vmatpush1.bf16.msra.mxu0 %v950
    %1785 = vmatprep.subr.bf16.mxu0 %v955
    %1786 = vmatpush1.bf16.msra.mxu0 %v954
    %1787 = vmatprep.subr.bf16.mxu0 %v959
    %1788 = vmatpush1.bf16.msra.mxu0 %v958
    %1789 = vmatprep.subr.bf16.mxu0 %v963
    %1790 = vmatpush1.bf16.msra.mxu0 %v962
    %1791 = vmatprep.subr.bf16.mxu0 %v967
    %1792 = vmatpush1.bf16.msra.mxu0 %v966
    %1793 = vmatprep.subr.bf16.mxu0 %v971
    %1794 = vmatpush1.bf16.msra.mxu0 %v970
    %1795 = vmatprep.subr.bf16.mxu0 %v975
    %1796 = vmatpush1.bf16.msra.mxu0 %v974
    %1797 = vmatprep.subr.bf16.mxu0 0
    %1798 = vmatpush1.bf16.msra.mxu0 0
    %1799 = vmatprep.subr.bf16.mxu0 0
    %1800 = vmatpush1.bf16.msra.mxu0 0
    %1801 = vmatprep.subr.bf16.mxu0 0
    %1802 = vmatpush1.bf16.msra.mxu0 0
    %1803 = vmatprep.subr.bf16.mxu0 0
    %1804 = vmatpush1.bf16.msra.mxu0 0
    %1805 = vmatprep.subr.bf16.mxu0 0
    %1806 = vmatpush1.bf16.msra.mxu0 0
    %1807 = vmatprep.subr.bf16.mxu0 0
    %1808 = vmatpush1.bf16.msra.mxu0 0
    %1809 = vmatprep.subr.bf16.mxu0 0
    %1810 = vmatpush1.bf16.msra.mxu0 0
    %1811 = vmatprep.subr.bf16.mxu0 0
    %1812 = vmatpush1.bf16.msra.mxu0 0
    %1813 = vmatprep.mubr.bf16.mxu0 0
    %1814 = vmatmul.mubr.bf16.gmra.mrb[0].mxu0 %v1737
    %v1815 = vpop.f32.mrb[0].mxu0
    %v1816 = vadd.f32 0.0, %v1815
    %v1817 = vpop.f32.mrb[0].mxu0
    %v1818 = vadd.f32 0.0, %v1817
    %v1819 = vpop.f32.mrb[0].mxu0
    %v1820 = vadd.f32 0.0, %v1819
    %v1821 = vpop.f32.mrb[0].mxu0
    %v1822 = vadd.f32 0.0, %v1821
    %1823 = vdwg.mxu0
    %v1824 = vadd.f32 %v1729, %v1773
    %v1825 = vadd.f32 %v1730, %v1775
    %v1826 = vadd.f32 %v1731, %v1816
    %v1827 = vadd.f32 %v1732, %v1818
    %v1828 = vadd.f32 %v1733, %v1777
    %v1829 = vadd.f32 %v1734, %v1779
    %v1830 = vadd.f32 %v1735, %v1820
    %v1831 = vadd.f32 %v1736, %v1822
    %v1832 = vmul.f32 %v1824, 0.5
    %v1833 = vmul.f32 %v1828, 0.5
    %v1834 = vtanh.pop %v1832
    %v1835 = vtanh.pop %v1833
    %v1836 = vadd.f32 %v1834, 1.0
    %v1837 = vadd.f32 %v1835, 1.0
    %v1838 = vmul.f32 %v1836, 0.5
    %v1839 = vmul.f32 %v1837, 0.5
    %v1840 = vmul.f32 %v1825, 0.5
    %v1841 = vmul.f32 %v1829, 0.5
    %v1842 = vtanh.pop %v1840
    %v1843 = vtanh.pop %v1841
    %v1844 = vadd.f32 %v1842, 1.0
    %v1845 = vadd.f32 %v1843, 1.0
    %v1846 = vmul.f32 %v1844, 0.5
    %v1847 = vmul.f32 %v1845, 0.5
    %v1848 = vtanh.pop %v1826
    %v1849 = vtanh.pop %v1830
    %v1850 = vmul.f32 %v1827, 0.5
    %v1851 = vmul.f32 %v1831, 0.5
    %v1852 = vtanh.pop %v1850
    %v1853 = vtanh.pop %v1851
    %v1854 = vadd.f32 %v1852, 1.0
    %v1855 = vadd.f32 %v1853, 1.0
    %v1856 = vmul.f32 %v1854, 0.5
    %v1857 = vmul.f32 %v1855, 0.5
    %v1858 = vmul.f32 %v1846, %v1716
    %v1859 = vmul.f32 %v1847, %v1717
    %v1860 = vmul.f32 %v1838, %v1848
    %v1861 = vmul.f32 %v1839, %v1849
    %v1862 = vadd.f32 %v1858, %v1860
    %v1863 = vadd.f32 %v1859, %v1861
    %v1864 = vtanh.pop %v1862
    %v1865 = vtanh.pop %v1863
    %v1866 = vmul.f32 %v1856, %v1864
    %v1867 = vmul.f32 %v1857, %v1865
    %s1868 = smul.u32 6, 4
    %s1869 = smul.addr %s1868, 8
    %s1870 = scalar_lea.vmem [#allocation4], %s1869
    %v1871 = vld [vmem:[%s1870] sm:$0xff]
    %v1872 = vld [vmem:[%s1870 + $0x8] sm:$0xff]
    %v1873 = vld [vmem:[%s1870 + $0x10] sm:$0xff]
    %v1874 = vld [vmem:[%s1870 + $0x18] sm:$0xff]
    %v1875 = vunpack.c.l.bf16 %v1871
    %v1876 = vunpack.c.l.bf16 %v1872
    %v1877 = vunpack.c.l.bf16 %v1873
    %v1878 = vunpack.c.l.bf16 %v1874
    %v1879 = vunpack.c.h.bf16 %v1871
    %v1880 = vunpack.c.h.bf16 %v1872
    %v1881 = vunpack.c.h.bf16 %v1873
    %v1882 = vunpack.c.h.bf16 %v1874
    %v1883 = vpack.c.bf16 %v1867, %v1866
    %1884 = vmatprep.subr.bf16.mxu0 %v945
    %1885 = vmatpush1.bf16.msra.mxu0 %v944
    %1886 = vmatprep.subr.bf16.mxu0 %v949
    %1887 = vmatpush1.bf16.msra.mxu0 %v948
    %1888 = vmatprep.subr.bf16.mxu0 %v953
    %1889 = vmatpush1.bf16.msra.mxu0 %v952
    %1890 = vmatprep.subr.bf16.mxu0 %v957
    %1891 = vmatpush1.bf16.msra.mxu0 %v956
    %1892 = vmatprep.subr.bf16.mxu0 %v961
    %1893 = vmatpush1.bf16.msra.mxu0 %v960
    %1894 = vmatprep.subr.bf16.mxu0 %v965
    %1895 = vmatpush1.bf16.msra.mxu0 %v964
    %1896 = vmatprep.subr.bf16.mxu0 %v969
    %1897 = vmatpush1.bf16.msra.mxu0 %v968
    %1898 = vmatprep.subr.bf16.mxu0 %v973
    %1899 = vmatpush1.bf16.msra.mxu0 %v972
    %1900 = vmatprep.subr.bf16.mxu0 0
    %1901 = vmatpush1.bf16.msra.mxu0 0
    %1902 = vmatprep.subr.bf16.mxu0 0
    %1903 = vmatpush1.bf16.msra.mxu0 0
    %1904 = vmatprep.subr.bf16.mxu0 0
    %1905 = vmatpush1.bf16.msra.mxu0 0
    %1906 = vmatprep.subr.bf16.mxu0 0
    %1907 = vmatpush1.bf16.msra.mxu0 0
    %1908 = vmatprep.subr.bf16.mxu0 0
    %1909 = vmatpush1.bf16.msra.mxu0 0
    %1910 = vmatprep.subr.bf16.mxu0 0
    %1911 = vmatpush1.bf16.msra.mxu0 0
    %1912 = vmatprep.subr.bf16.mxu0 0
    %1913 = vmatpush1.bf16.msra.mxu0 0
    %1914 = vmatprep.subr.bf16.mxu0 0
    %1915 = vmatpush1.bf16.msra.mxu0 0
    %1916 = vmatprep.mubr.bf16.mxu0 0
    %1917 = vmatmul.mubr.bf16.gmra.mrb[0].mxu0 %v1883
    %v1918 = vpop.f32.mrb[0].mxu0
    %v1919 = vadd.f32 0.0, %v1918
    %v1920 = vpop.f32.mrb[0].mxu0
    %v1921 = vadd.f32 0.0, %v1920
    %v1922 = vpop.f32.mrb[0].mxu0
    %v1923 = vadd.f32 0.0, %v1922
    %v1924 = vpop.f32.mrb[0].mxu0
    %v1925 = vadd.f32 0.0, %v1924
    %1926 = vdwg.mxu0
    %1927 = vmatprep.subr.bf16.mxu0 %v947
    %1928 = vmatpush1.bf16.msra.mxu0 %v946
    %1929 = vmatprep.subr.bf16.mxu0 %v951
    %1930 = vmatpush1.bf16.msra.mxu0 %v950
    %1931 = vmatprep.subr.bf16.mxu0 %v955
    %1932 = vmatpush1.bf16.msra.mxu0 %v954
    %1933 = vmatprep.subr.bf16.mxu0 %v959
    %1934 = vmatpush1.bf16.msra.mxu0 %v958
    %1935 = vmatprep.subr.bf16.mxu0 %v963
    %1936 = vmatpush1.bf16.msra.mxu0 %v962
    %1937 = vmatprep.subr.bf16.mxu0 %v967
    %1938 = vmatpush1.bf16.msra.mxu0 %v966
    %1939 = vmatprep.subr.bf16.mxu0 %v971
    %1940 = vmatpush1.bf16.msra.mxu0 %v970
    %1941 = vmatprep.subr.bf16.mxu0 %v975
    %1942 = vmatpush1.bf16.msra.mxu0 %v974
    %1943 = vmatprep.subr.bf16.mxu0 0
    %1944 = vmatpush1.bf16.msra.mxu0 0
    %1945 = vmatprep.subr.bf16.mxu0 0
    %1946 = vmatpush1.bf16.msra.mxu0 0
    %1947 = vmatprep.subr.bf16.mxu0 0
    %1948 = vmatpush1.bf16.msra.mxu0 0
    %1949 = vmatprep.subr.bf16.mxu0 0
    %1950 = vmatpush1.bf16.msra.mxu0 0
    %1951 = vmatprep.subr.bf16.mxu0 0
    %1952 = vmatpush1.bf16.msra.mxu0 0
    %1953 = vmatprep.subr.bf16.mxu0 0
    %1954 = vmatpush1.bf16.msra.mxu0 0
    %1955 = vmatprep.subr.bf16.mxu0 0
    %1956 = vmatpush1.bf16.msra.mxu0 0
    %1957 = vmatprep.subr.bf16.mxu0 0
    %1958 = vmatpush1.bf16.msra.mxu0 0
    %1959 = vmatprep.mubr.bf16.mxu0 0
    %1960 = vmatmul.mubr.bf16.gmra.mrb[0].mxu0 %v1883
    %v1961 = vpop.f32.mrb[0].mxu0
    %v1962 = vadd.f32 0.0, %v1961
    %v1963 = vpop.f32.mrb[0].mxu0
    %v1964 = vadd.f32 0.0, %v1963
    %v1965 = vpop.f32.mrb[0].mxu0
    %v1966 = vadd.f32 0.0, %v1965
    %v1967 = vpop.f32.mrb[0].mxu0
    %v1968 = vadd.f32 0.0, %v1967
    %1969 = vdwg.mxu0
    %v1970 = vadd.f32 %v1875, %v1919
    %v1971 = vadd.f32 %v1876, %v1921
    %v1972 = vadd.f32 %v1877, %v1962
    %v1973 = vadd.f32 %v1878, %v1964
    %v1974 = vadd.f32 %v1879, %v1923
    %v1975 = vadd.f32 %v1880, %v1925
    %v1976 = vadd.f32 %v1881, %v1966
    %v1977 = vadd.f32 %v1882, %v1968
    %v1978 = vmul.f32 %v1970, 0.5
    %v1979 = vmul.f32 %v1974, 0.5
    %v1980 = vtanh.pop %v1978
    %v1981 = vtanh.pop %v1979
    %v1982 = vadd.f32 %v1980, 1.0
    %v1983 = vadd.f32 %v1981, 1.0
    %v1984 = vmul.f32 %v1982, 0.5
    %v1985 = vmul.f32 %v1983, 0.5
    %v1986 = vmul.f32 %v1971, 0.5
    %v1987 = vmul.f32 %v1975, 0.5
    %v1988 = vtanh.pop %v1986
    %v1989 = vtanh.pop %v1987
    %v1990 = vadd.f32 %v1988, 1.0
    %v1991 = vadd.f32 %v1989, 1.0
    %v1992 = vmul.f32 %v1990, 0.5
    %v1993 = vmul.f32 %v1991, 0.5
    %v1994 = vtanh.pop %v1972
    %v1995 = vtanh.pop %v1976
    %v1996 = vmul.f32 %v1973, 0.5
    %v1997 = vmul.f32 %v1977, 0.5
    %v1998 = vtanh.pop %v1996
    %v1999 = vtanh.pop %v1997
    %v2000 = vadd.f32 %v1998, 1.0
    %v2001 = vadd.f32 %v1999, 1.0
    %v2002 = vmul.f32 %v2000, 0.5
    %v2003 = vmul.f32 %v2001, 0.5
    %v2004 = vmul.f32 %v1992, %v1862
    %v2005 = vmul.f32 %v1993, %v1863
    %v2006 = vmul.f32 %v1984, %v1994
    %v2007 = vmul.f32 %v1985, %v1995
    %v2008 = vadd.f32 %v2004, %v2006
    %v2009 = vadd.f32 %v2005, %v2007
    %v2010 = vtanh.pop %v2008
    %v2011 = vtanh.pop %v2009
    %v2012 = vmul.f32 %v2002, %v2010
    %v2013 = vmul.f32 %v2003, %v2011
    %s2014 = smul.u32 7, 4
    %s2015 = smul.addr %s2014, 8
    %s2016 = scalar_lea.vmem [#allocation4], %s2015
    %v2017 = vld [vmem:[%s2016] sm:$0xff]
    %v2018 = vld [vmem:[%s2016 + $0x8] sm:$0xff]
    %v2019 = vld [vmem:[%s2016 + $0x10] sm:$0xff]
    %v2020 = vld [vmem:[%s2016 + $0x18] sm:$0xff]
    %v2021 = vunpack.c.l.bf16 %v2017
    %v2022 = vunpack.c.l.bf16 %v2018
    %v2023 = vunpack.c.l.bf16 %v2019
    %v2024 = vunpack.c.l.bf16 %v2020
    %v2025 = vunpack.c.h.bf16 %v2017
    %v2026 = vunpack.c.h.bf16 %v2018
    %v2027 = vunpack.c.h.bf16 %v2019
    %v2028 = vunpack.c.h.bf16 %v2020
    %v2029 = vpack.c.bf16 %v2013, %v2012
    %2030 = vmatprep.subr.bf16.mxu0 %v945
    %2031 = vmatpush1.bf16.msra.mxu0 %v944
    %2032 = vmatprep.subr.bf16.mxu0 %v949
    %2033 = vmatpush1.bf16.msra.mxu0 %v948
    %2034 = vmatprep.subr.bf16.mxu0 %v953
    %2035 = vmatpush1.bf16.msra.mxu0 %v952
    %2036 = vmatprep.subr.bf16.mxu0 %v957
    %2037 = vmatpush1.bf16.msra.mxu0 %v956
    %2038 = vmatprep.subr.bf16.mxu0 %v961
    %2039 = vmatpush1.bf16.msra.mxu0 %v960
    %2040 = vmatprep.subr.bf16.mxu0 %v965
    %2041 = vmatpush1.bf16.msra.mxu0 %v964
    %2042 = vmatprep.subr.bf16.mxu0 %v969
    %2043 = vmatpush1.bf16.msra.mxu0 %v968
    %2044 = vmatprep.subr.bf16.mxu0 %v973
    %2045 = vmatpush1.bf16.msra.mxu0 %v972
    %2046 = vmatprep.subr.bf16.mxu0 0
    %2047 = vmatpush1.bf16.msra.mxu0 0
    %2048 = vmatprep.subr.bf16.mxu0 0
    %2049 = vmatpush1.bf16.msra.mxu0 0
    %2050 = vmatprep.subr.bf16.mxu0 0
    %2051 = vmatpush1.bf16.msra.mxu0 0
    %2052 = vmatprep.subr.bf16.mxu0 0
    %2053 = vmatpush1.bf16.msra.mxu0 0
    %2054 = vmatprep.subr.bf16.mxu0 0
    %2055 = vmatpush1.bf16.msra.mxu0 0
    %2056 = vmatprep.subr.bf16.mxu0 0
    %2057 = vmatpush1.bf16.msra.mxu0 0
    %2058 = vmatprep.subr.bf16.mxu0 0
    %2059 = vmatpush1.bf16.msra.mxu0 0
    %2060 = vmatprep.subr.bf16.mxu0 0
    %2061 = vmatpush1.bf16.msra.mxu0 0
    %2062 = vmatprep.mubr.bf16.mxu0 0
    %2063 = vmatmul.mubr.bf16.gmra.mrb[0].mxu0 %v2029
    %v2064 = vpop.f32.mrb[0].mxu0
    %v2065 = vadd.f32 0.0, %v2064
    %v2066 = vpop.f32.mrb[0].mxu0
    %v2067 = vadd.f32 0.0, %v2066
    %v2068 = vpop.f32.mrb[0].mxu0
    %v2069 = vadd.f32 0.0, %v2068
    %v2070 = vpop.f32.mrb[0].mxu0
    %v2071 = vadd.f32 0.0, %v2070
    %2072 = vdwg.mxu0
    %2073 = vmatprep.subr.bf16.mxu0 %v947
    %2074 = vmatpush1.bf16.msra.mxu0 %v946
    %2075 = vmatprep.subr.bf16.mxu0 %v951
    %2076 = vmatpush1.bf16.msra.mxu0 %v950
    %2077 = vmatprep.subr.bf16.mxu0 %v955
    %2078 = vmatpush1.bf16.msra.mxu0 %v954
    %2079 = vmatprep.subr.bf16.mxu0 %v959
    %2080 = vmatpush1.bf16.msra.mxu0 %v958
    %2081 = vmatprep.subr.bf16.mxu0 %v963
    %2082 = vmatpush1.bf16.msra.mxu0 %v962
    %2083 = vmatprep.subr.bf16.mxu0 %v967
    %2084 = vmatpush1.bf16.msra.mxu0 %v966
    %2085 = vmatprep.subr.bf16.mxu0 %v971
    %2086 = vmatpush1.bf16.msra.mxu0 %v970
    %2087 = vmatprep.subr.bf16.mxu0 %v975
    %2088 = vmatpush1.bf16.msra.mxu0 %v974
    %2089 = vmatprep.subr.bf16.mxu0 0
    %2090 = vmatpush1.bf16.msra.mxu0 0
    %2091 = vmatprep.subr.bf16.mxu0 0
    %2092 = vmatpush1.bf16.msra.mxu0 0
    %2093 = vmatprep.subr.bf16.mxu0 0
    %2094 = vmatpush1.bf16.msra.mxu0 0
    %2095 = vmatprep.subr.bf16.mxu0 0
    %2096 = vmatpush1.bf16.msra.mxu0 0
    %2097 = vmatprep.subr.bf16.mxu0 0
    %2098 = vmatpush1.bf16.msra.mxu0 0
    %2099 = vmatprep.subr.bf16.mxu0 0
    %2100 = vmatpush1.bf16.msra.mxu0 0
    %2101 = vmatprep.subr.bf16.mxu0 0
    %2102 = vmatpush1.bf16.msra.mxu0 0
    %2103 = vmatprep.subr.bf16.mxu0 0
    %2104 = vmatpush1.bf16.msra.mxu0 0
    %2105 = vmatprep.mubr.bf16.mxu0 0
    %2106 = vmatmul.mubr.bf16.gmra.mrb[0].mxu0 %v2029
    %v2107 = vpop.f32.mrb[0].mxu0
    %v2108 = vadd.f32 0.0, %v2107
    %v2109 = vpop.f32.mrb[0].mxu0
    %v2110 = vadd.f32 0.0, %v2109
    %v2111 = vpop.f32.mrb[0].mxu0
    %v2112 = vadd.f32 0.0, %v2111
    %v2113 = vpop.f32.mrb[0].mxu0
    %v2114 = vadd.f32 0.0, %v2113
    %2115 = vdwg.mxu0
    %v2116 = vadd.f32 %v2021, %v2065
    %v2117 = vadd.f32 %v2022, %v2067
    %v2118 = vadd.f32 %v2023, %v2108
    %v2119 = vadd.f32 %v2024, %v2110
    %v2120 = vadd.f32 %v2025, %v2069
    %v2121 = vadd.f32 %v2026, %v2071
    %v2122 = vadd.f32 %v2027, %v2112
    %v2123 = vadd.f32 %v2028, %v2114
    %v2124 = vmul.f32 %v2116, 0.5
    %v2125 = vmul.f32 %v2120, 0.5
    %v2126 = vtanh.pop %v2124
    %v2127 = vtanh.pop %v2125
    %v2128 = vadd.f32 %v2126, 1.0
    %v2129 = vadd.f32 %v2127, 1.0
    %v2130 = vmul.f32 %v2128, 0.5
    %v2131 = vmul.f32 %v2129, 0.5
    %v2132 = vmul.f32 %v2117, 0.5
    %v2133 = vmul.f32 %v2121, 0.5
    %v2134 = vtanh.pop %v2132
    %v2135 = vtanh.pop %v2133
    %v2136 = vadd.f32 %v2134, 1.0
    %v2137 = vadd.f32 %v2135, 1.0
    %v2138 = vmul.f32 %v2136, 0.5
    %v2139 = vmul.f32 %v2137, 0.5
    %v2140 = vtanh.pop %v2118
    %v2141 = vtanh.pop %v2122
    %v2142 = vmul.f32 %v2119, 0.5
    %v2143 = vmul.f32 %v2123, 0.5
    %v2144 = vtanh.pop %v2142
    %v2145 = vtanh.pop %v2143
    %v2146 = vadd.f32 %v2144, 1.0
    %v2147 = vadd.f32 %v2145, 1.0
    %v2148 = vmul.f32 %v2146, 0.5
    %v2149 = vmul.f32 %v2147, 0.5
    %v2150 = vmul.f32 %v2138, %v2008
    %v2151 = vmul.f32 %v2139, %v2009
    %v2152 = vmul.f32 %v2130, %v2140
    %v2153 = vmul.f32 %v2131, %v2141
    %v2154 = vadd.f32 %v2150, %v2152
    %v2155 = vadd.f32 %v2151, %v2153
    %v2156 = vtanh.pop %v2154
    %v2157 = vtanh.pop %v2155
    %v2158 = vmul.f32 %v2148, %v2156
    %v2159 = vmul.f32 %v2149, %v2157
    %2160 = vst [vmem:[#allocation2] sm:$0xff] %v2158
    %2161 = vst [vmem:[#allocation2 + $0x8] sm:$0xff] %v2159
    %2162 = vst [vmem:[#allocation3] sm:$0xff] %v2154
    %2163 = vst [vmem:[#allocation3 + $0x8] sm:$0xff] %v2155
    // Predicated region
    $region38: #{tpu_custom_call.1} parent=1 // pred_check
      %p2164 = pneg %p64
    $region39: #{tpu_custom_call.1} parent=1 // pred_check_branch
      %2166 = sbr.rel (%p2164) target = $region41
    $region40: #{tpu_custom_call.1} parent=1 // pred_region
      %v2167 = vpack.c.bf16 %v2159, %v2158
      %v2168 = vld [vmem:[%s5] sm:$0xf]
      %v2169 = vld [vmem:[%s5 + $0x4] sm:$0xf]
      %v2170 = vld [vmem:[%s5 + $0x8] sm:$0xf]
      %v2171 = vld [vmem:[%s5 + $0xc] sm:$0xf]
      %v2172 = vld [vmem:[%s5 + $0x10] sm:$0xf]
      %v2173 = vld [vmem:[%s5 + $0x14] sm:$0xf]
      %v2174 = vld [vmem:[%s5 + $0x18] sm:$0xf]
      %v2175 = vld [vmem:[%s5 + $0x1c] sm:$0xf]
      %v2176 = vld [vmem:[%s5 + $0x20] sm:$0xf]
      %v2177 = vld [vmem:[%s5 + $0x24] sm:$0xf]
      %v2178 = vld [vmem:[%s5 + $0x28] sm:$0xf]
      %v2179 = vld [vmem:[%s5 + $0x2c] sm:$0xf]
      %v2180 = vld [vmem:[%s5 + $0x30] sm:$0xf]
      %v2181 = vld [vmem:[%s5 + $0x34] sm:$0xf]
      %v2182 = vld [vmem:[%s5 + $0x38] sm:$0xf]
      %v2183 = vld [vmem:[%s5 + $0x3c] sm:$0xf]
      %v2184 = vld [vmem:[%s6] sm:$0x1]
      %v2186 = vlaneseq
      %v2187 = vshrl.u32 %v2186, 7
      %v2188 = vsub.s32 0, %v2187
      %v2189 = vrot.slane %v2184, %v2188
      %v2207 = vunpack.c.l.b16 %v2168
      %v2208 = vunpack.c.l.b16 %v2169
      %v2209 = vunpack.c.l.b16 %v2170
      %v2210 = vunpack.c.l.b16 %v2171
      %v2211 = vunpack.c.l.b16 %v2172
      %v2212 = vunpack.c.l.b16 %v2173
      %v2213 = vunpack.c.l.b16 %v2174
      %v2214 = vunpack.c.l.b16 %v2175
      %v2215 = vunpack.c.l.b16 %v2176
      %v2216 = vunpack.c.l.b16 %v2177
      %v2217 = vunpack.c.l.b16 %v2178
      %v2218 = vunpack.c.l.b16 %v2179
      %v2219 = vunpack.c.l.b16 %v2180
      %v2220 = vunpack.c.l.b16 %v2181
      %v2221 = vunpack.c.l.b16 %v2182
      %v2222 = vunpack.c.l.b16 %v2183
      %v2223 = vpack.c.b16 %v2208, %v2207
      %v2224 = vpack.c.b16 %v2210, %v2209
      %v2225 = vpack.c.b16 %v2212, %v2211
      %v2226 = vpack.c.b16 %v2214, %v2213
      %v2227 = vpack.c.b16 %v2216, %v2215
      %v2228 = vpack.c.b16 %v2218, %v2217
      %v2229 = vpack.c.b16 %v2220, %v2219
      %v2230 = vpack.c.b16 %v2222, %v2221
      %2239 = vmatprep.subr.bf16.mxu0 0
      %2240 = vmatpush1.bf16.msra.mxu0 %v2223
      %2241 = vmatprep.subr.bf16.mxu0 0
      %2242 = vmatpush1.bf16.msra.mxu0 %v2224
      %2243 = vmatprep.subr.bf16.mxu0 0
      %2244 = vmatpush1.bf16.msra.mxu0 %v2225
      %2245 = vmatprep.subr.bf16.mxu0 0
      %2246 = vmatpush1.bf16.msra.mxu0 %v2226
      %2247 = vmatprep.subr.bf16.mxu0 0
      %2248 = vmatpush1.bf16.msra.mxu0 %v2227
      %2249 = vmatprep.subr.bf16.mxu0 0
      %2250 = vmatpush1.bf16.msra.mxu0 %v2228
      %2251 = vmatprep.subr.bf16.mxu0 0
      %2252 = vmatpush1.bf16.msra.mxu0 %v2229
      %2253 = vmatprep.subr.bf16.mxu0 0
      %2254 = vmatpush1.bf16.msra.mxu0 %v2230
      %2255 = vmatprep.subr.bf16.mxu0 0
      %2256 = vmatpush1.bf16.msra.mxu0 0
      %2257 = vmatprep.subr.bf16.mxu0 0
      %2258 = vmatpush1.bf16.msra.mxu0 0
      %2259 = vmatprep.subr.bf16.mxu0 0
      %2260 = vmatpush1.bf16.msra.mxu0 0
      %2261 = vmatprep.subr.bf16.mxu0 0
      %2262 = vmatpush1.bf16.msra.mxu0 0
      %2263 = vmatprep.subr.bf16.mxu0 0
      %2264 = vmatpush1.bf16.msra.mxu0 0
      %2265 = vmatprep.subr.bf16.mxu0 0
      %2266 = vmatpush1.bf16.msra.mxu0 0
      %2267 = vmatprep.subr.bf16.mxu0 0
      %2268 = vmatpush1.bf16.msra.mxu0 0
      %2269 = vmatprep.subr.bf16.mxu0 0
      %2270 = vmatpush1.bf16.msra.mxu0 0
      %2271 = vmatprep.mubr.bf16.mxu0 0
      %2272 = vmatmul.mubr.bf16.gmra.mrb[0].mxu0 %v2167
      %v2273 = vpop.f32.mrb[0].mxu0
      %v2274 = vadd.f32 %v2189, %v2273
      %v2275 = vpop.f32.mrb[0].mxu0
      %v2276 = vpop.f32.mrb[0].mxu0
      %v2277 = vadd.f32 %v2189, %v2276
      %v2278 = vpop.f32.mrb[0].mxu0
      %2279 = vdwg.mxu0
      %v2280 = vmul.f32 %v2274, 0.5
      %v2281 = vmul.f32 %v2277, 0.5
      %v2282 = vtanh.pop %v2280
      %v2283 = vtanh.pop %v2281
      %v2284 = vadd.f32 %v2282, 1.0
      %v2285 = vadd.f32 %v2283, 1.0
      %v2286 = vmul.f32 %v2284, 0.5
      %v2287 = vmul.f32 %v2285, 0.5
      %2288 = vst [vmem:[#allocation8] sm:$0xff] %v2286
      %2289 = vst [vmem:[#allocation8 + $0x8] sm:$0xff] %v2287
    $region41: #{tpu_custom_call.1} parent=1 // pred_fallthru
      _
    // Predicated region
    $region42: #{tpu_custom_call.1} parent=1 // pred_check
      _
    $region43: #{tpu_custom_call.1} parent=1 // pred_check_branch
      %2291 = sbr.rel (0) target = $region45
    $region44: #{tpu_custom_call.1} parent=1 // pred_region
      %s2293 = ssub.s32 256, 256
      %2294 = vsyncadd [#allocation7], %s2293
      %s2295 = sshll.u32 [#allocation8], 4
      %s2296 = int_to_ptr.vmem [resolvable:$true] %s2295
      %2301 = dma.vmem_to_hbm [thread:$0]  %s2296, 256, %s7, [#allocation7], 128, 128, 8
    $region45: #{tpu_custom_call.1} parent=1 // pred_fallthru
      _
    // Predicated region
    $region46: #{tpu_custom_call.1} parent=1 // pred_check
      _
    $region47: #{tpu_custom_call.1} parent=1 // pred_check_branch
      %2303 = sbr.rel (0) target = $region49
    $region48: #{tpu_custom_call.1} parent=1 // pred_region
      %2304 = dma.done [#allocation7], 256
    $region49: #{tpu_custom_call.1} parent=1 // pred_fallthru
      _
    %2305 = vsyncpa [#allocation6], 1
    %2306 = vsyncpa [#allocation7], 1

</llo_original>
